<compile_context>
chip_gen: v5e
topology: v5e:2x2
jax: 0.10.0
libtpu: 0.0.40
codegen_flags: <defaults>
</compile_context>

<pallas_src>
import jax
import jax.numpy as jnp
from jax.experimental import pallas as pl
from jax.experimental.pallas import tpu as pltpu

TOP_EIGEN = 10                      # matches OrthoLayer(top_eigen=10)
_PALLAS_MIN_OUT_BYTES = 1 << 20     # below ~1 MiB of output, XLA einsum wins


def _proj_kernel(tu_ref, o_ref):
    # tu_ref block: (TB, M, K)   o_ref block: (TB, M, M)
    tu = tu_ref[...]
    # Contract on the last axis of both operands -> no explicit transpose,
    # MXU is fed directly with no cross-lane shuffle.  f32 accumulation.
    proj = jnp.einsum("bmk,bnk->bmn", tu, tu,
                      preferred_element_type=jnp.float32)
    o_ref[...] = proj.astype(o_ref.dtype)


def _choose_tb(B, target=256):
    """Batches of matrices per grid step.

    target=256 amortizes the ~0.35us per-step overhead over 256 matrices while
    keeping double-buffered VMEM use < 1 MiB (M=16, K<=16).  Shrink so the grid
    keeps >= 2 steps when possible (v7x megacore: 2 TCs share the batch axis).
    """
    tb = target
    while tb > 8 and 2 * tb > B:
        tb //= 2
    return max(tb, 1)


def _batched_projector(tu):
    """tu: (B, M, K) f32 -> (B, M, M) f32 via Pallas, TB matrices per grid step."""
    B, M, K = tu.shape
    tb = _choose_tb(B)
    Bp = pl.cdiv(B, tb) * tb
    if Bp != B:
        # Zero-pad the batch; zero rows give zero projector blocks, sliced off.
        tu = jnp.pad(tu, ((0, Bp - B), (0, 0), (0, 0)))

    out = pl.pallas_call(
        _proj_kernel,
        out_shape=jax.ShapeDtypeStruct((Bp, M, M), tu.dtype),
        grid_spec=pltpu.PrefetchScalarGridSpec(
            num_scalar_prefetch=0,
            grid=(Bp // tb,),
            # Last-two-dims of the blocks equal the full array dims (M, K) /
            # (M, M), so the (8, 128) divisibility rule is satisfied.
            in_specs=[pl.BlockSpec((tb, M, K), lambda b: (b, 0, 0))],
            out_specs=pl.BlockSpec((tb, M, M), lambda b: (b, 0, 0)),
        ),
        compiler_params=pltpu.CompilerParams(
            dimension_semantics=("parallel",),
        ),
    )(tu)
    return out[:B]


def ortho_layer(x, top_eigen=TOP_EIGEN, force_pallas=False):
    """Forward pass of OrthoLayer for x of shape [..., M, N]."""
    x = jnp.asarray(x, jnp.float32)
    *batch, M, N = x.shape
    xb = x.reshape((-1, M, N))

    # TODO(synk): SVD has no Pallas/MXU equivalent; computed in plain JAX.
    # (When N >> M, eigh of X @ X^T would give the same top-K projector more
    #  cheaply; kept as SVD to mirror torch.svd semantics exactly.)
    u, _, _ = jnp.linalg.svd(xb, full_matrices=False)   # (B, M, min(M, N))
    tu = u[..., :top_eigen]                             # silently clamps like torch

    B = tu.shape[0]
    if force_pallas or B * M * M * 4 >= _PALLAS_MIN_OUT_BYTES:
        out = _batched_projector(tu)                    # (B, M, M) via Pallas
    else:
        # Tiny problem: fused XLA einsum beats the pallas_call launch overhead.
        out = jnp.einsum("bmk,bnk->bmn", tu, tu)

    return out.reshape((*batch, M, M))


def _reference(x, top_eigen=TOP_EIGEN):
    u, _, _ = jnp.linalg.svd(jnp.asarray(x, jnp.float32), full_matrices=False)
    tu = u[..., :top_eigen]
    return jnp.einsum("...mk,...nk->...mn", tu, tu)


if __name__ == "__main__":
    key = jax.random.PRNGKey(0)
    k1, k2 = jax.random.split(key)

    # Small shape consistent with the module (takes the XLA fallback path).
    x_small = jax.random.normal(k1, (2, 16, 16), dtype=jnp.float32)
    out_small = jax.block_until_ready(ortho_layer(x_small))

    # Moderate batch forced through the Pallas kernel; 200 is deliberately not
    # a multiple of the block size to exercise the padding path (TB=64, grid=4).
    x_big = jax.random.normal(k2, (200, 16, 16), dtype=jnp.float32)
    out_big = jax.block_until_ready(ortho_layer(x_big, force_pallas=True))

    assert out_small.shape == (2, 16, 16)
    assert out_big.shape == (200, 16, 16)
    assert jnp.max(jnp.abs(out_small - _reference(x_small))) < 1e-4
    assert jnp.max(jnp.abs(out_big - _reference(x_big))) < 1e-4

    # Projector sanity: symmetric, trace == top_eigen (rank-K orthogonal proj).
    tr = jnp.trace(out_big, axis1=-2, axis2=-1)
    assert jnp.max(jnp.abs(tr - TOP_EIGEN)) < 1e-3
    assert jnp.max(jnp.abs(out_big - jnp.swapaxes(out_big, -1, -2))) < 1e-5

    print("KERNEL_OK")
</pallas_src>

<mosaic_0001>
module attributes {stable_mosaic.version = 11 : i64} {
  func.func @_proj_kernel(%arg0: i32, %arg1: memref<64x16x10xf32, #tpu.memory_space<vmem>>, %arg2: memref<64x16x16xf32, #tpu.memory_space<vmem>>) attributes {dimension_semantics = [#tpu.dimension_semantics<parallel>], iteration_bounds = array<i64: 4>, scalar_prefetch = 0 : i64, scratch_operands = 0 : i64, tpu.core_type = #tpu.core_type<tc>, window_params = [{transform_indices = @transform_0, window_bounds = array<i64: 64, 16, 10>}, {transform_indices = @transform_1, window_bounds = array<i64: 64, 16, 16>}]} {
    %c0 = arith.constant 0 : index
    %c0_0 = arith.constant 0 : index
    %c0_1 = arith.constant 0 : index
    %0 = vector.load %arg1[%c0, %c0_0, %c0_1] : memref<64x16x10xf32, #tpu.memory_space<vmem>>, vector<64x16x10xf32>
    "tpu.trace_start"() <{level = 10 : i32, message = "bmk,bnk->bmn"}> : () -> ()
    %cst = arith.constant dense<0.000000e+00> : vector<64x16x16xf32>
    %1 = tpu.matmul %0, %0, %cst {dimension_numbers = #tpu.dot_dimension_numbers<[2], [2], [1], [1], [0, 0, 0, 1, 1, 1], [0], [0]>} : vector<64x16x10xf32>, vector<64x16x10xf32>, vector<64x16x16xf32> -> vector<64x16x16xf32>
    "tpu.trace_stop"() : () -> ()
    %c0_2 = arith.constant 0 : index
    %c0_3 = arith.constant 0 : index
    %c0_4 = arith.constant 0 : index
    %2 = vector.load %arg2[%c0_2, %c0_3, %c0_4] : memref<64x16x16xf32, #tpu.memory_space<vmem>>, vector<64x16x16xf32>
    tpu.vector_store %arg2[%c0_2, %c0_3, %c0_4], %1 {strides = array<i32>} : memref<64x16x16xf32, #tpu.memory_space<vmem>>, vector<64x16x16xf32>,
    return
  }
  func.func @transform_0(%arg0: i32) -> (i32, i32, i32) {
    %c0_i32 = arith.constant 0 : i32
    %c0_i32_0 = arith.constant 0 : i32
    %c0_i32_1 = arith.constant 0 : i32
    return %arg0, %c0_i32, %c0_i32_0 : i32, i32, i32
  }
  func.func @transform_1(%arg0: i32) -> (i32, i32, i32) {
    %c0_i32 = arith.constant 0 : i32
    %c0_i32_0 = arith.constant 0 : i32
    %c0_i32_1 = arith.constant 0 : i32
    return %arg0, %c0_i32, %c0_i32_0 : i32, i32, i32
  }
}

</mosaic_0001>

<llo_original>
// kernel: tpu_custom_call.1
$region0: #{tpu_custom_call.1}
  #allocation0 [shape = 'u32[]', space=smem, size = 0x4, offset = 0x4, fixed_abs, tag = 'smem constant byte address 0x4 - core index']
  #allocation1 [shape = 'u32[72,128]{1,0:T(1,128)}', space=vmem, size = 0x9000, scoped, tag = 'internal scratch']
  %s0 = inlined_call_operand.vmem [shape: f32[256,16,10], index: 0, kind: input, shape index: {}]
  %s1 = inlined_call_operand.vmem [shape: f32[256,16,16], index: 1, kind: output, shape index: {}]
  %s2 = sld [smem:[#allocation0]]
  $region37: #{tpu_custom_call.1} parent=0
    _
  %s4 = ssub.s32 1, %s2
  %s5 = scalar_select 0, %s4, %s2
  loop: start=0, step=1, limit=6
  $region2: #{tpu_custom_call.1} parent=0 // loop_pre_header
    _
  $region3: #{tpu_custom_call.1} parent=0 // loop_header
    %s7 = sphi 0, %s11
    %p8 = scmp.ge.s32.totalorder %s7, 6
    %s17 = sphi 0, %s19
    %s20 = sphi 0, %s17
    %s21 = sphi 0, %s20
    %s37 = sphi 0, %s21
    %s43 = sphi 0, %s45
    %s46 = sphi 0, %s43
    %s47 = sphi 0, %s46
    %s63 = sphi 0, %s47
  $region4: #{tpu_custom_call.1} parent=0 // loop_header_branch
    %10 = sbr.rel (%p8) target = $region8
  $region5: #{tpu_custom_call.1} parent=0 // loop_body
    %s12 = ssub.s32 %s7, 1
    %s13 = ssub.s32 %s7, 2
    %s14 = sadd.s32 %s7, 1
    %s15 = ssub.s32 %s7, %s14
    %p16 = scmp.eq.s32.totalorder %s15, 0
    %s18 = sadd.s32 %s17, 1
    %s19 = scalar_select %p16, %s17, %s18
    %p22 = pneg %p16
    %p23 = scmp.eq.s32.totalorder %s7, 3
    %p24 = por %p22, %p23
    %p25 = scmp.ne.s32.totalorder %s17, %s20
    %p26 = scmp.eq.s32.totalorder %s7, 0
    %p27 = por %p25, %p26
    %p28 = scmp.ne.s32.totalorder %s17, %s20
    %p29 = scmp.eq.s32.totalorder %s12, 3
    %p30 = por %p28, %p29
    %p31 = scmp.ne.s32.totalorder %s20, %s21
    %p32 = scmp.eq.s32.totalorder %s12, 0
    %p33 = por %p31, %p32
    %p34 = scmp.ne.s32.totalorder %s20, %s21
    %p35 = scmp.eq.s32.totalorder %s13, 3
    %p36 = por %p34, %p35
    %p38 = scmp.ne.s32.totalorder %s21, %s37
    %p39 = scmp.eq.s32.totalorder %s13, 0
    %p40 = por %p38, %p39
    %s41 = ssub.s32 %s7, %s14
    %p42 = scmp.eq.s32.totalorder %s41, 0
    %s44 = sadd.s32 %s43, 1
    %s45 = scalar_select %p42, %s43, %s44
    %p48 = pneg %p42
    %p49 = scmp.eq.s32.totalorder %s7, 3
    %p50 = por %p48, %p49
    %p51 = scmp.ne.s32.totalorder %s43, %s46
    %p52 = scmp.eq.s32.totalorder %s7, 0
    %p53 = por %p51, %p52
    %p54 = scmp.ne.s32.totalorder %s43, %s46
    %p55 = scmp.eq.s32.totalorder %s12, 3
    %p56 = por %p54, %p55
    %p57 = scmp.ne.s32.totalorder %s46, %s47
    %p58 = scmp.eq.s32.totalorder %s12, 0
    %p59 = por %p57, %p58
    %p60 = scmp.ne.s32.totalorder %s46, %s47
    %p61 = scmp.eq.s32.totalorder %s13, 3
    %p62 = por %p60, %p61
    %p64 = scmp.ne.s32.totalorder %s47, %s63
    %p65 = scmp.eq.s32.totalorder %s13, 0
    %p66 = por %p64, %p65
    %p67 = scmp.le.s32.totalorder 1, %s7
    %p68 = scmp.lt.s32.totalorder %s7, 5
    %p69 = pnand %p67, %p68
    %p70 = pneg %p69
    // Predicated region
    $region9: #{tpu_custom_call.1} parent=5 // pred_check
      _
    $region10: #{tpu_custom_call.1} parent=5 // pred_check_branch
      %72 = sbr.rel (%p69) target = $region12
    $region11: #{tpu_custom_call.1} parent=5 // pred_region
      %s73 = ssub.s32 %s7, 1
    $region12: #{tpu_custom_call.1} parent=5 // pred_fallthru
      _
    %p74 = scmp.lt.s32.totalorder %s7, 4
    // Predicated region
    $region13: #{tpu_custom_call.1} parent=5 // pred_check
      %p75 = pneg %p74
    $region14: #{tpu_custom_call.1} parent=5 // pred_check_branch
      %77 = sbr.rel (%p75) target = $region16
    $region15: #{tpu_custom_call.1} parent=5 // pred_region
      // Predicated region
      $region17: #{tpu_custom_call.1} parent=15 // pred_check
        %p78 = pneg %p27
      $region18: #{tpu_custom_call.1} parent=15 // pred_check_branch
        %80 = sbr.rel (%p78) target = $region20
      $region19: #{tpu_custom_call.1} parent=15 // pred_region
        %s81 = smul.u32 64, %s7
        %p82 = scmp.lt.s32.totalorder %s81, 255
        %s83 = scalar_select %p82, %s81, 255
        %s84 = smul.addr %s83, 2
        %s85 = smul.addr %s84, 8
        %s86 = scalar_lea.vmem %s0, %s85
        %s87 = smul.u32 64, %s7
      $region20: #{tpu_custom_call.1} parent=15 // pred_fallthru
        _
    $region16: #{tpu_custom_call.1} parent=5 // pred_fallthru
      _
    %p88 = scmp.le.s32.totalorder 1, %s7
    %p89 = scmp.lt.s32.totalorder %s7, 5
    %p90 = pnand %p88, %p89
    %p91 = pneg %p90
    // Predicated region
    $region21: #{tpu_custom_call.1} parent=5 // pred_check
      _
    $region22: #{tpu_custom_call.1} parent=5 // pred_check_branch
      %93 = sbr.rel (%p90) target = $region24
    $region23: #{tpu_custom_call.1} parent=5 // pred_region
      %s94 = ssub.s32 %s7, 1
      %s95 = smul.u32 64, %s12
      %p96 = scmp.lt.s32.totalorder %s95, 255
      %s97 = scalar_select %p96, %s95, 255
      %s98 = smul.addr %s97, 2
      %s99 = smul.addr %s98, 8
      %s100 = scalar_lea.vmem %s0, %s99
      %p101 = pneg %p33
      %p102 = pneg %p30
      %p103 = pneg %p59
      %p104 = pneg %p56
      %s105 = smul.u32 64, %s12
      %p106 = scmp.lt.s32.totalorder %s105, 255
      %s107 = scalar_select %p106, %s105, 255
      %s108 = smul.addr %s107, 2
      %s109 = smul.addr %s108, 8
      %s110 = scalar_lea.vmem %s1, %s109
      %s111 = smul.u32 64, %s12
      %p112 = scmp.lt.s32.totalorder %s111, 255
      %s113 = scalar_select %p112, %s111, 255
      %s114 = smul.addr %s113, 2
      %s115 = smul.addr %s114, 8
      %s116 = scalar_lea.vmem %s0, %s115
      %s117 = smul.u32 64, %s12
      %s118 = smul.u32 64, %s12
      %p119 = scmp.lt.s32.totalorder %s118, 255
      %s120 = scalar_select %p119, %s118, 255
      %s121 = smul.addr %s120, 2
      %s122 = smul.addr %s121, 8
      %s123 = scalar_lea.vmem %s1, %s122
      %s124 = smul.u32 64, %s12
      %v125 = vld [vmem:[%s116] sm:$0xff]
      %v126 = vld [vmem:[%s116 + $0x8] sm:$0xff]
      %v127 = vld [vmem:[%s116 + $0x10] sm:$0xff]
      %v128 = vld [vmem:[%s116 + $0x18] sm:$0xff]
      %v129 = vld [vmem:[%s116 + $0x20] sm:$0xff]
      %v130 = vld [vmem:[%s116 + $0x28] sm:$0xff]
      %v131 = vld [vmem:[%s116 + $0x30] sm:$0xff]
      %v132 = vld [vmem:[%s116 + $0x38] sm:$0xff]
      %v133 = vld [vmem:[%s116 + $0x40] sm:$0xff]
      %v134 = vld [vmem:[%s116 + $0x48] sm:$0xff]
      %v135 = vld [vmem:[%s116 + $0x50] sm:$0xff]
      %v136 = vld [vmem:[%s116 + $0x58] sm:$0xff]
      %v137 = vld [vmem:[%s116 + $0x60] sm:$0xff]
      %v138 = vld [vmem:[%s116 + $0x68] sm:$0xff]
      %v139 = vld [vmem:[%s116 + $0x70] sm:$0xff]
      %v140 = vld [vmem:[%s116 + $0x78] sm:$0xff]
      %v141 = vld [vmem:[%s116 + $0x80] sm:$0xff]
      %v142 = vld [vmem:[%s116 + $0x88] sm:$0xff]
      %v143 = vld [vmem:[%s116 + $0x90] sm:$0xff]
      %v144 = vld [vmem:[%s116 + $0x98] sm:$0xff]
      %v145 = vld [vmem:[%s116 + $0xa0] sm:$0xff]
      %v146 = vld [vmem:[%s116 + $0xa8] sm:$0xff]
      %v147 = vld [vmem:[%s116 + $0xb0] sm:$0xff]
      %v148 = vld [vmem:[%s116 + $0xb8] sm:$0xff]
      %v149 = vld [vmem:[%s116 + $0xc0] sm:$0xff]
      %v150 = vld [vmem:[%s116 + $0xc8] sm:$0xff]
      %v151 = vld [vmem:[%s116 + $0xd0] sm:$0xff]
      %v152 = vld [vmem:[%s116 + $0xd8] sm:$0xff]
      %v153 = vld [vmem:[%s116 + $0xe0] sm:$0xff]
      %v154 = vld [vmem:[%s116 + $0xe8] sm:$0xff]
      %v155 = vld [vmem:[%s116 + $0xf0] sm:$0xff]
      %v156 = vld [vmem:[%s116 + $0xf8] sm:$0xff]
      %v157 = vld [vmem:[%s116 + $0x100] sm:$0xff]
      %v158 = vld [vmem:[%s116 + $0x108] sm:$0xff]
      %v159 = vld [vmem:[%s116 + $0x110] sm:$0xff]
      %v160 = vld [vmem:[%s116 + $0x118] sm:$0xff]
      %v161 = vld [vmem:[%s116 + $0x120] sm:$0xff]
      %v162 = vld [vmem:[%s116 + $0x128] sm:$0xff]
      %v163 = vld [vmem:[%s116 + $0x130] sm:$0xff]
      %v164 = vld [vmem:[%s116 + $0x138] sm:$0xff]
      %v165 = vld [vmem:[%s116 + $0x140] sm:$0xff]
      %v166 = vld [vmem:[%s116 + $0x148] sm:$0xff]
      %v167 = vld [vmem:[%s116 + $0x150] sm:$0xff]
      %v168 = vld [vmem:[%s116 + $0x158] sm:$0xff]
      %v169 = vld [vmem:[%s116 + $0x160] sm:$0xff]
      %v170 = vld [vmem:[%s116 + $0x168] sm:$0xff]
      %v171 = vld [vmem:[%s116 + $0x170] sm:$0xff]
      %v172 = vld [vmem:[%s116 + $0x178] sm:$0xff]
      %v173 = vld [vmem:[%s116 + $0x180] sm:$0xff]
      %v174 = vld [vmem:[%s116 + $0x188] sm:$0xff]
      %v175 = vld [vmem:[%s116 + $0x190] sm:$0xff]
      %v176 = vld [vmem:[%s116 + $0x198] sm:$0xff]
      %v177 = vld [vmem:[%s116 + $0x1a0] sm:$0xff]
      %v178 = vld [vmem:[%s116 + $0x1a8] sm:$0xff]
      %v179 = vld [vmem:[%s116 + $0x1b0] sm:$0xff]
      %v180 = vld [vmem:[%s116 + $0x1b8] sm:$0xff]
      %v181 = vld [vmem:[%s116 + $0x1c0] sm:$0xff]
      %v182 = vld [vmem:[%s116 + $0x1c8] sm:$0xff]
      %v183 = vld [vmem:[%s116 + $0x1d0] sm:$0xff]
      %v184 = vld [vmem:[%s116 + $0x1d8] sm:$0xff]
      %v185 = vld [vmem:[%s116 + $0x1e0] sm:$0xff]
      %v186 = vld [vmem:[%s116 + $0x1e8] sm:$0xff]
      %v187 = vld [vmem:[%s116 + $0x1f0] sm:$0xff]
      %v188 = vld [vmem:[%s116 + $0x1f8] sm:$0xff]
      %v189 = vld [vmem:[%s116 + $0x200] sm:$0xff]
      %v190 = vld [vmem:[%s116 + $0x208] sm:$0xff]
      %v191 = vld [vmem:[%s116 + $0x210] sm:$0xff]
      %v192 = vld [vmem:[%s116 + $0x218] sm:$0xff]
      %v193 = vld [vmem:[%s116 + $0x220] sm:$0xff]
      %v194 = vld [vmem:[%s116 + $0x228] sm:$0xff]
      %v195 = vld [vmem:[%s116 + $0x230] sm:$0xff]
      %v196 = vld [vmem:[%s116 + $0x238] sm:$0xff]
      %v197 = vld [vmem:[%s116 + $0x240] sm:$0xff]
      %v198 = vld [vmem:[%s116 + $0x248] sm:$0xff]
      %v199 = vld [vmem:[%s116 + $0x250] sm:$0xff]
      %v200 = vld [vmem:[%s116 + $0x258] sm:$0xff]
      %v201 = vld [vmem:[%s116 + $0x260] sm:$0xff]
      %v202 = vld [vmem:[%s116 + $0x268] sm:$0xff]
      %v203 = vld [vmem:[%s116 + $0x270] sm:$0xff]
      %v204 = vld [vmem:[%s116 + $0x278] sm:$0xff]
      %v205 = vld [vmem:[%s116 + $0x280] sm:$0xff]
      %v206 = vld [vmem:[%s116 + $0x288] sm:$0xff]
      %v207 = vld [vmem:[%s116 + $0x290] sm:$0xff]
      %v208 = vld [vmem:[%s116 + $0x298] sm:$0xff]
      %v209 = vld [vmem:[%s116 + $0x2a0] sm:$0xff]
      %v210 = vld [vmem:[%s116 + $0x2a8] sm:$0xff]
      %v211 = vld [vmem:[%s116 + $0x2b0] sm:$0xff]
      %v212 = vld [vmem:[%s116 + $0x2b8] sm:$0xff]
      %v213 = vld [vmem:[%s116 + $0x2c0] sm:$0xff]
      %v214 = vld [vmem:[%s116 + $0x2c8] sm:$0xff]
      %v215 = vld [vmem:[%s116 + $0x2d0] sm:$0xff]
      %v216 = vld [vmem:[%s116 + $0x2d8] sm:$0xff]
      %v217 = vld [vmem:[%s116 + $0x2e0] sm:$0xff]
      %v218 = vld [vmem:[%s116 + $0x2e8] sm:$0xff]
      %v219 = vld [vmem:[%s116 + $0x2f0] sm:$0xff]
      %v220 = vld [vmem:[%s116 + $0x2f8] sm:$0xff]
      %v221 = vld [vmem:[%s116 + $0x300] sm:$0xff]
      %v222 = vld [vmem:[%s116 + $0x308] sm:$0xff]
      %v223 = vld [vmem:[%s116 + $0x310] sm:$0xff]
      %v224 = vld [vmem:[%s116 + $0x318] sm:$0xff]
      %v225 = vld [vmem:[%s116 + $0x320] sm:$0xff]
      %v226 = vld [vmem:[%s116 + $0x328] sm:$0xff]
      %v227 = vld [vmem:[%s116 + $0x330] sm:$0xff]
      %v228 = vld [vmem:[%s116 + $0x338] sm:$0xff]
      %v229 = vld [vmem:[%s116 + $0x340] sm:$0xff]
      %v230 = vld [vmem:[%s116 + $0x348] sm:$0xff]
      %v231 = vld [vmem:[%s116 + $0x350] sm:$0xff]
      %v232 = vld [vmem:[%s116 + $0x358] sm:$0xff]
      %v233 = vld [vmem:[%s116 + $0x360] sm:$0xff]
      %v234 = vld [vmem:[%s116 + $0x368] sm:$0xff]
      %v235 = vld [vmem:[%s116 + $0x370] sm:$0xff]
      %v236 = vld [vmem:[%s116 + $0x378] sm:$0xff]
      %v237 = vld [vmem:[%s116 + $0x380] sm:$0xff]
      %v238 = vld [vmem:[%s116 + $0x388] sm:$0xff]
      %v239 = vld [vmem:[%s116 + $0x390] sm:$0xff]
      %v240 = vld [vmem:[%s116 + $0x398] sm:$0xff]
      %v241 = vld [vmem:[%s116 + $0x3a0] sm:$0xff]
      %v242 = vld [vmem:[%s116 + $0x3a8] sm:$0xff]
      %v243 = vld [vmem:[%s116 + $0x3b0] sm:$0xff]
      %v244 = vld [vmem:[%s116 + $0x3b8] sm:$0xff]
      %v245 = vld [vmem:[%s116 + $0x3c0] sm:$0xff]
      %v246 = vld [vmem:[%s116 + $0x3c8] sm:$0xff]
      %v247 = vld [vmem:[%s116 + $0x3d0] sm:$0xff]
      %v248 = vld [vmem:[%s116 + $0x3d8] sm:$0xff]
      %v249 = vld [vmem:[%s116 + $0x3e0] sm:$0xff]
      %v250 = vld [vmem:[%s116 + $0x3e8] sm:$0xff]
      %v251 = vld [vmem:[%s116 + $0x3f0] sm:$0xff]
      %v252 = vld [vmem:[%s116 + $0x3f8] sm:$0xff]
      %vm253 = vcmask 80896
      %v255 = vsel %vm253, %v125, 0
      %v258 = vsel %vm253, %v126, 0
      %260 = vmatpush.xpose.msra.mxu0 0.0
      %261 = vmatpush.xpose.msra.mxu0 0.0
      %262 = vmatpush.xpose.msra.mxu0 0.0
      %263 = vmatpush.xpose.msra.mxu0 0.0
      %264 = vmatpush.xpose.msra.mxu0 0.0
      %265 = vmatpush.xpose.msra.mxu0 0.0
      %266 = vmatpush.xpose.msra.mxu0 0.0
      %267 = vmatpush.xpose.msra.mxu0 0.0
      %268 = vmatpush.xpose.msra.mxu0 0.0
      %269 = vmatpush.xpose.msra.mxu0 0.0
      %270 = vmatpush.xpose.msra.mxu0 0.0
      %271 = vmatpush.xpose.msra.mxu0 0.0
      %272 = vmatpush.xpose.msra.mxu0 0.0
      %273 = vmatpush.xpose.msra.mxu0 0.0
      %274 = vmatpush.xpose.msra.mxu0 %v258
      %275 = vmatpush.xpose.msra.mxu0 %v255
      %276 = vmatmul.f32.gmra.mxu0 %v255
      %v277 = vpop.f32.mrf.mxu0
      %v278 = vadd.f32 0.0, %v277
      %279 = vmatmul.f32.gmra.mxu0 %v258
      %v280 = vpop.f32.mrf.mxu0
      %v281 = vadd.f32 0.0, %v280
      %282 = vdwg.mxu0
      %v284 = vsel %vm253, %v127, 0
      %v287 = vsel %vm253, %v128, 0
      %289 = vmatpush.xpose.msra.mxu0 0.0
      %290 = vmatpush.xpose.msra.mxu0 0.0
      %291 = vmatpush.xpose.msra.mxu0 0.0
      %292 = vmatpush.xpose.msra.mxu0 0.0
      %293 = vmatpush.xpose.msra.mxu0 0.0
      %294 = vmatpush.xpose.msra.mxu0 0.0
      %295 = vmatpush.xpose.msra.mxu0 0.0
      %296 = vmatpush.xpose.msra.mxu0 0.0
      %297 = vmatpush.xpose.msra.mxu0 0.0
      %298 = vmatpush.xpose.msra.mxu0 0.0
      %299 = vmatpush.xpose.msra.mxu0 0.0
      %300 = vmatpush.xpose.msra.mxu0 0.0
      %301 = vmatpush.xpose.msra.mxu0 0.0
      %302 = vmatpush.xpose.msra.mxu0 0.0
      %303 = vmatpush.xpose.msra.mxu0 %v287
      %304 = vmatpush.xpose.msra.mxu0 %v284
      %305 = vmatmul.f32.gmra.mxu0 %v284
      %v306 = vpop.f32.mrf.mxu0
      %v307 = vadd.f32 0.0, %v306
      %308 = vmatmul.f32.gmra.mxu0 %v287
      %v309 = vpop.f32.mrf.mxu0
      %v310 = vadd.f32 0.0, %v309
      %311 = vdwg.mxu0
      %v313 = vsel %vm253, %v129, 0
      %v316 = vsel %vm253, %v130, 0
      %318 = vmatpush.xpose.msra.mxu0 0.0
      %319 = vmatpush.xpose.msra.mxu0 0.0
      %320 = vmatpush.xpose.msra.mxu0 0.0
      %321 = vmatpush.xpose.msra.mxu0 0.0
      %322 = vmatpush.xpose.msra.mxu0 0.0
      %323 = vmatpush.xpose.msra.mxu0 0.0
      %324 = vmatpush.xpose.msra.mxu0 0.0
      %325 = vmatpush.xpose.msra.mxu0 0.0
      %326 = vmatpush.xpose.msra.mxu0 0.0
      %327 = vmatpush.xpose.msra.mxu0 0.0
      %328 = vmatpush.xpose.msra.mxu0 0.0
      %329 = vmatpush.xpose.msra.mxu0 0.0
      %330 = vmatpush.xpose.msra.mxu0 0.0
      %331 = vmatpush.xpose.msra.mxu0 0.0
      %332 = vmatpush.xpose.msra.mxu0 %v316
      %333 = vmatpush.xpose.msra.mxu0 %v313
      %334 = vmatmul.f32.gmra.mxu0 %v313
      %v335 = vpop.f32.mrf.mxu0
      %v336 = vadd.f32 0.0, %v335
      %337 = vmatmul.f32.gmra.mxu0 %v316
      %v338 = vpop.f32.mrf.mxu0
      %v339 = vadd.f32 0.0, %v338
      %340 = vdwg.mxu0
      %v342 = vsel %vm253, %v131, 0
      %v345 = vsel %vm253, %v132, 0
      %347 = vmatpush.xpose.msra.mxu0 0.0
      %348 = vmatpush.xpose.msra.mxu0 0.0
      %349 = vmatpush.xpose.msra.mxu0 0.0
      %350 = vmatpush.xpose.msra.mxu0 0.0
      %351 = vmatpush.xpose.msra.mxu0 0.0
      %352 = vmatpush.xpose.msra.mxu0 0.0
      %353 = vmatpush.xpose.msra.mxu0 0.0
      %354 = vmatpush.xpose.msra.mxu0 0.0
      %355 = vmatpush.xpose.msra.mxu0 0.0
      %356 = vmatpush.xpose.msra.mxu0 0.0
      %357 = vmatpush.xpose.msra.mxu0 0.0
      %358 = vmatpush.xpose.msra.mxu0 0.0
      %359 = vmatpush.xpose.msra.mxu0 0.0
      %360 = vmatpush.xpose.msra.mxu0 0.0
      %361 = vmatpush.xpose.msra.mxu0 %v345
      %362 = vmatpush.xpose.msra.mxu0 %v342
      %363 = vmatmul.f32.gmra.mxu0 %v342
      %v364 = vpop.f32.mrf.mxu0
      %v365 = vadd.f32 0.0, %v364
      %366 = vmatmul.f32.gmra.mxu0 %v345
      %v367 = vpop.f32.mrf.mxu0
      %v368 = vadd.f32 0.0, %v367
      %369 = vdwg.mxu0
      %v371 = vsel %vm253, %v133, 0
      %v374 = vsel %vm253, %v134, 0
      %376 = vmatpush.xpose.msra.mxu0 0.0
      %377 = vmatpush.xpose.msra.mxu0 0.0
      %378 = vmatpush.xpose.msra.mxu0 0.0
      %379 = vmatpush.xpose.msra.mxu0 0.0
      %380 = vmatpush.xpose.msra.mxu0 0.0
      %381 = vmatpush.xpose.msra.mxu0 0.0
      %382 = vmatpush.xpose.msra.mxu0 0.0
      %383 = vmatpush.xpose.msra.mxu0 0.0
      %384 = vmatpush.xpose.msra.mxu0 0.0
      %385 = vmatpush.xpose.msra.mxu0 0.0
      %386 = vmatpush.xpose.msra.mxu0 0.0
      %387 = vmatpush.xpose.msra.mxu0 0.0
      %388 = vmatpush.xpose.msra.mxu0 0.0
      %389 = vmatpush.xpose.msra.mxu0 0.0
      %390 = vmatpush.xpose.msra.mxu0 %v374
      %391 = vmatpush.xpose.msra.mxu0 %v371
      %392 = vmatmul.f32.gmra.mxu0 %v371
      %v393 = vpop.f32.mrf.mxu0
      %v394 = vadd.f32 0.0, %v393
      %395 = vmatmul.f32.gmra.mxu0 %v374
      %v396 = vpop.f32.mrf.mxu0
      %v397 = vadd.f32 0.0, %v396
      %398 = vdwg.mxu0
      %v400 = vsel %vm253, %v135, 0
      %v403 = vsel %vm253, %v136, 0
      %405 = vmatpush.xpose.msra.mxu0 0.0
      %406 = vmatpush.xpose.msra.mxu0 0.0
      %407 = vmatpush.xpose.msra.mxu0 0.0
      %408 = vmatpush.xpose.msra.mxu0 0.0
      %409 = vmatpush.xpose.msra.mxu0 0.0
      %410 = vmatpush.xpose.msra.mxu0 0.0
      %411 = vmatpush.xpose.msra.mxu0 0.0
      %412 = vmatpush.xpose.msra.mxu0 0.0
      %413 = vmatpush.xpose.msra.mxu0 0.0
      %414 = vmatpush.xpose.msra.mxu0 0.0
      %415 = vmatpush.xpose.msra.mxu0 0.0
      %416 = vmatpush.xpose.msra.mxu0 0.0
      %417 = vmatpush.xpose.msra.mxu0 0.0
      %418 = vmatpush.xpose.msra.mxu0 0.0
      %419 = vmatpush.xpose.msra.mxu0 %v403
      %420 = vmatpush.xpose.msra.mxu0 %v400
      %421 = vmatmul.f32.gmra.mxu0 %v400
      %v422 = vpop.f32.mrf.mxu0
      %v423 = vadd.f32 0.0, %v422
      %424 = vmatmul.f32.gmra.mxu0 %v403
      %v425 = vpop.f32.mrf.mxu0
      %v426 = vadd.f32 0.0, %v425
      %427 = vdwg.mxu0
      %v429 = vsel %vm253, %v137, 0
      %v432 = vsel %vm253, %v138, 0
      %434 = vmatpush.xpose.msra.mxu0 0.0
      %435 = vmatpush.xpose.msra.mxu0 0.0
      %436 = vmatpush.xpose.msra.mxu0 0.0
      %437 = vmatpush.xpose.msra.mxu0 0.0
      %438 = vmatpush.xpose.msra.mxu0 0.0
      %439 = vmatpush.xpose.msra.mxu0 0.0
      %440 = vmatpush.xpose.msra.mxu0 0.0
      %441 = vmatpush.xpose.msra.mxu0 0.0
      %442 = vmatpush.xpose.msra.mxu0 0.0
      %443 = vmatpush.xpose.msra.mxu0 0.0
      %444 = vmatpush.xpose.msra.mxu0 0.0
      %445 = vmatpush.xpose.msra.mxu0 0.0
      %446 = vmatpush.xpose.msra.mxu0 0.0
      %447 = vmatpush.xpose.msra.mxu0 0.0
      %448 = vmatpush.xpose.msra.mxu0 %v432
      %449 = vmatpush.xpose.msra.mxu0 %v429
      %450 = vmatmul.f32.gmra.mxu0 %v429
      %v451 = vpop.f32.mrf.mxu0
      %v452 = vadd.f32 0.0, %v451
      %453 = vmatmul.f32.gmra.mxu0 %v432
      %v454 = vpop.f32.mrf.mxu0
      %v455 = vadd.f32 0.0, %v454
      %456 = vdwg.mxu0
      %v458 = vsel %vm253, %v139, 0
      %v461 = vsel %vm253, %v140, 0
      %463 = vmatpush.xpose.msra.mxu0 0.0
      %464 = vmatpush.xpose.msra.mxu0 0.0
      %465 = vmatpush.xpose.msra.mxu0 0.0
      %466 = vmatpush.xpose.msra.mxu0 0.0
      %467 = vmatpush.xpose.msra.mxu0 0.0
      %468 = vmatpush.xpose.msra.mxu0 0.0
      %469 = vmatpush.xpose.msra.mxu0 0.0
      %470 = vmatpush.xpose.msra.mxu0 0.0
      %471 = vmatpush.xpose.msra.mxu0 0.0
      %472 = vmatpush.xpose.msra.mxu0 0.0
      %473 = vmatpush.xpose.msra.mxu0 0.0
      %474 = vmatpush.xpose.msra.mxu0 0.0
      %475 = vmatpush.xpose.msra.mxu0 0.0
      %476 = vmatpush.xpose.msra.mxu0 0.0
      %477 = vmatpush.xpose.msra.mxu0 %v461
      %478 = vmatpush.xpose.msra.mxu0 %v458
      %479 = vmatmul.f32.gmra.mxu0 %v458
      %v480 = vpop.f32.mrf.mxu0
      %v481 = vadd.f32 0.0, %v480
      %482 = vmatmul.f32.gmra.mxu0 %v461
      %v483 = vpop.f32.mrf.mxu0
      %v484 = vadd.f32 0.0, %v483
      %485 = vdwg.mxu0
      %v487 = vsel %vm253, %v141, 0
      %v490 = vsel %vm253, %v142, 0
      %492 = vmatpush.xpose.msra.mxu0 0.0
      %493 = vmatpush.xpose.msra.mxu0 0.0
      %494 = vmatpush.xpose.msra.mxu0 0.0
      %495 = vmatpush.xpose.msra.mxu0 0.0
      %496 = vmatpush.xpose.msra.mxu0 0.0
      %497 = vmatpush.xpose.msra.mxu0 0.0
      %498 = vmatpush.xpose.msra.mxu0 0.0
      %499 = vmatpush.xpose.msra.mxu0 0.0
      %500 = vmatpush.xpose.msra.mxu0 0.0
      %501 = vmatpush.xpose.msra.mxu0 0.0
      %502 = vmatpush.xpose.msra.mxu0 0.0
      %503 = vmatpush.xpose.msra.mxu0 0.0
      %504 = vmatpush.xpose.msra.mxu0 0.0
      %505 = vmatpush.xpose.msra.mxu0 0.0
      %506 = vmatpush.xpose.msra.mxu0 %v490
      %507 = vmatpush.xpose.msra.mxu0 %v487
      %508 = vmatmul.f32.gmra.mxu0 %v487
      %v509 = vpop.f32.mrf.mxu0
      %v510 = vadd.f32 0.0, %v509
      %511 = vmatmul.f32.gmra.mxu0 %v490
      %v512 = vpop.f32.mrf.mxu0
      %v513 = vadd.f32 0.0, %v512
      %514 = vdwg.mxu0
      %v516 = vsel %vm253, %v143, 0
      %v519 = vsel %vm253, %v144, 0
      %521 = vmatpush.xpose.msra.mxu0 0.0
      %522 = vmatpush.xpose.msra.mxu0 0.0
      %523 = vmatpush.xpose.msra.mxu0 0.0
      %524 = vmatpush.xpose.msra.mxu0 0.0
      %525 = vmatpush.xpose.msra.mxu0 0.0
      %526 = vmatpush.xpose.msra.mxu0 0.0
      %527 = vmatpush.xpose.msra.mxu0 0.0
      %528 = vmatpush.xpose.msra.mxu0 0.0
      %529 = vmatpush.xpose.msra.mxu0 0.0
      %530 = vmatpush.xpose.msra.mxu0 0.0
      %531 = vmatpush.xpose.msra.mxu0 0.0
      %532 = vmatpush.xpose.msra.mxu0 0.0
      %533 = vmatpush.xpose.msra.mxu0 0.0
      %534 = vmatpush.xpose.msra.mxu0 0.0
      %535 = vmatpush.xpose.msra.mxu0 %v519
      %536 = vmatpush.xpose.msra.mxu0 %v516
      %537 = vmatmul.f32.gmra.mxu0 %v516
      %v538 = vpop.f32.mrf.mxu0
      %v539 = vadd.f32 0.0, %v538
      %540 = vmatmul.f32.gmra.mxu0 %v519
      %v541 = vpop.f32.mrf.mxu0
      %v542 = vadd.f32 0.0, %v541
      %543 = vdwg.mxu0
      %v545 = vsel %vm253, %v145, 0
      %v548 = vsel %vm253, %v146, 0
      %550 = vmatpush.xpose.msra.mxu0 0.0
      %551 = vmatpush.xpose.msra.mxu0 0.0
      %552 = vmatpush.xpose.msra.mxu0 0.0
      %553 = vmatpush.xpose.msra.mxu0 0.0
      %554 = vmatpush.xpose.msra.mxu0 0.0
      %555 = vmatpush.xpose.msra.mxu0 0.0
      %556 = vmatpush.xpose.msra.mxu0 0.0
      %557 = vmatpush.xpose.msra.mxu0 0.0
      %558 = vmatpush.xpose.msra.mxu0 0.0
      %559 = vmatpush.xpose.msra.mxu0 0.0
      %560 = vmatpush.xpose.msra.mxu0 0.0
      %561 = vmatpush.xpose.msra.mxu0 0.0
      %562 = vmatpush.xpose.msra.mxu0 0.0
      %563 = vmatpush.xpose.msra.mxu0 0.0
      %564 = vmatpush.xpose.msra.mxu0 %v548
      %565 = vmatpush.xpose.msra.mxu0 %v545
      %566 = vmatmul.f32.gmra.mxu0 %v545
      %v567 = vpop.f32.mrf.mxu0
      %v568 = vadd.f32 0.0, %v567
      %569 = vmatmul.f32.gmra.mxu0 %v548
      %v570 = vpop.f32.mrf.mxu0
      %v571 = vadd.f32 0.0, %v570
      %572 = vdwg.mxu0
      %v574 = vsel %vm253, %v147, 0
      %v577 = vsel %vm253, %v148, 0
      %579 = vmatpush.xpose.msra.mxu0 0.0
      %580 = vmatpush.xpose.msra.mxu0 0.0
      %581 = vmatpush.xpose.msra.mxu0 0.0
      %582 = vmatpush.xpose.msra.mxu0 0.0
      %583 = vmatpush.xpose.msra.mxu0 0.0
      %584 = vmatpush.xpose.msra.mxu0 0.0
      %585 = vmatpush.xpose.msra.mxu0 0.0
      %586 = vmatpush.xpose.msra.mxu0 0.0
      %587 = vmatpush.xpose.msra.mxu0 0.0
      %588 = vmatpush.xpose.msra.mxu0 0.0
      %589 = vmatpush.xpose.msra.mxu0 0.0
      %590 = vmatpush.xpose.msra.mxu0 0.0
      %591 = vmatpush.xpose.msra.mxu0 0.0
      %592 = vmatpush.xpose.msra.mxu0 0.0
      %593 = vmatpush.xpose.msra.mxu0 %v577
      %594 = vmatpush.xpose.msra.mxu0 %v574
      %595 = vmatmul.f32.gmra.mxu0 %v574
      %v596 = vpop.f32.mrf.mxu0
      %v597 = vadd.f32 0.0, %v596
      %598 = vmatmul.f32.gmra.mxu0 %v577
      %v599 = vpop.f32.mrf.mxu0
      %v600 = vadd.f32 0.0, %v599
      %601 = vdwg.mxu0
      %v603 = vsel %vm253, %v149, 0
      %v606 = vsel %vm253, %v150, 0
      %608 = vmatpush.xpose.msra.mxu0 0.0
      %609 = vmatpush.xpose.msra.mxu0 0.0
      %610 = vmatpush.xpose.msra.mxu0 0.0
      %611 = vmatpush.xpose.msra.mxu0 0.0
      %612 = vmatpush.xpose.msra.mxu0 0.0
      %613 = vmatpush.xpose.msra.mxu0 0.0
      %614 = vmatpush.xpose.msra.mxu0 0.0
      %615 = vmatpush.xpose.msra.mxu0 0.0
      %616 = vmatpush.xpose.msra.mxu0 0.0
      %617 = vmatpush.xpose.msra.mxu0 0.0
      %618 = vmatpush.xpose.msra.mxu0 0.0
      %619 = vmatpush.xpose.msra.mxu0 0.0
      %620 = vmatpush.xpose.msra.mxu0 0.0
      %621 = vmatpush.xpose.msra.mxu0 0.0
      %622 = vmatpush.xpose.msra.mxu0 %v606
      %623 = vmatpush.xpose.msra.mxu0 %v603
      %624 = vmatmul.f32.gmra.mxu0 %v603
      %v625 = vpop.f32.mrf.mxu0
      %v626 = vadd.f32 0.0, %v625
      %627 = vmatmul.f32.gmra.mxu0 %v606
      %v628 = vpop.f32.mrf.mxu0
      %v629 = vadd.f32 0.0, %v628
      %630 = vdwg.mxu0
      %v632 = vsel %vm253, %v151, 0
      %v635 = vsel %vm253, %v152, 0
      %637 = vmatpush.xpose.msra.mxu0 0.0
      %638 = vmatpush.xpose.msra.mxu0 0.0
      %639 = vmatpush.xpose.msra.mxu0 0.0
      %640 = vmatpush.xpose.msra.mxu0 0.0
      %641 = vmatpush.xpose.msra.mxu0 0.0
      %642 = vmatpush.xpose.msra.mxu0 0.0
      %643 = vmatpush.xpose.msra.mxu0 0.0
      %644 = vmatpush.xpose.msra.mxu0 0.0
      %645 = vmatpush.xpose.msra.mxu0 0.0
      %646 = vmatpush.xpose.msra.mxu0 0.0
      %647 = vmatpush.xpose.msra.mxu0 0.0
      %648 = vmatpush.xpose.msra.mxu0 0.0
      %649 = vmatpush.xpose.msra.mxu0 0.0
      %650 = vmatpush.xpose.msra.mxu0 0.0
      %651 = vmatpush.xpose.msra.mxu0 %v635
      %652 = vmatpush.xpose.msra.mxu0 %v632
      %653 = vmatmul.f32.gmra.mxu0 %v632
      %v654 = vpop.f32.mrf.mxu0
      %v655 = vadd.f32 0.0, %v654
      %656 = vmatmul.f32.gmra.mxu0 %v635
      %v657 = vpop.f32.mrf.mxu0
      %v658 = vadd.f32 0.0, %v657
      %659 = vdwg.mxu0
      %v661 = vsel %vm253, %v153, 0
      %v664 = vsel %vm253, %v154, 0
      %666 = vmatpush.xpose.msra.mxu0 0.0
      %667 = vmatpush.xpose.msra.mxu0 0.0
      %668 = vmatpush.xpose.msra.mxu0 0.0
      %669 = vmatpush.xpose.msra.mxu0 0.0
      %670 = vmatpush.xpose.msra.mxu0 0.0
      %671 = vmatpush.xpose.msra.mxu0 0.0
      %672 = vmatpush.xpose.msra.mxu0 0.0
      %673 = vmatpush.xpose.msra.mxu0 0.0
      %674 = vmatpush.xpose.msra.mxu0 0.0
      %675 = vmatpush.xpose.msra.mxu0 0.0
      %676 = vmatpush.xpose.msra.mxu0 0.0
      %677 = vmatpush.xpose.msra.mxu0 0.0
      %678 = vmatpush.xpose.msra.mxu0 0.0
      %679 = vmatpush.xpose.msra.mxu0 0.0
      %680 = vmatpush.xpose.msra.mxu0 %v664
      %681 = vmatpush.xpose.msra.mxu0 %v661
      %682 = vmatmul.f32.gmra.mxu0 %v661
      %v683 = vpop.f32.mrf.mxu0
      %v684 = vadd.f32 0.0, %v683
      %685 = vmatmul.f32.gmra.mxu0 %v664
      %v686 = vpop.f32.mrf.mxu0
      %v687 = vadd.f32 0.0, %v686
      %688 = vdwg.mxu0
      %v690 = vsel %vm253, %v155, 0
      %v693 = vsel %vm253, %v156, 0
      %695 = vmatpush.xpose.msra.mxu0 0.0
      %696 = vmatpush.xpose.msra.mxu0 0.0
      %697 = vmatpush.xpose.msra.mxu0 0.0
      %698 = vmatpush.xpose.msra.mxu0 0.0
      %699 = vmatpush.xpose.msra.mxu0 0.0
      %700 = vmatpush.xpose.msra.mxu0 0.0
      %701 = vmatpush.xpose.msra.mxu0 0.0
      %702 = vmatpush.xpose.msra.mxu0 0.0
      %703 = vmatpush.xpose.msra.mxu0 0.0
      %704 = vmatpush.xpose.msra.mxu0 0.0
      %705 = vmatpush.xpose.msra.mxu0 0.0
      %706 = vmatpush.xpose.msra.mxu0 0.0
      %707 = vmatpush.xpose.msra.mxu0 0.0
      %708 = vmatpush.xpose.msra.mxu0 0.0
      %709 = vmatpush.xpose.msra.mxu0 %v693
      %710 = vmatpush.xpose.msra.mxu0 %v690
      %711 = vmatmul.f32.gmra.mxu0 %v690
      %v712 = vpop.f32.mrf.mxu0
      %v713 = vadd.f32 0.0, %v712
      %714 = vmatmul.f32.gmra.mxu0 %v693
      %v715 = vpop.f32.mrf.mxu0
      %v716 = vadd.f32 0.0, %v715
      %717 = vdwg.mxu0
      %v719 = vsel %vm253, %v157, 0
      %v722 = vsel %vm253, %v158, 0
      %724 = vmatpush.xpose.msra.mxu0 0.0
      %725 = vmatpush.xpose.msra.mxu0 0.0
      %726 = vmatpush.xpose.msra.mxu0 0.0
      %727 = vmatpush.xpose.msra.mxu0 0.0
      %728 = vmatpush.xpose.msra.mxu0 0.0
      %729 = vmatpush.xpose.msra.mxu0 0.0
      %730 = vmatpush.xpose.msra.mxu0 0.0
      %731 = vmatpush.xpose.msra.mxu0 0.0
      %732 = vmatpush.xpose.msra.mxu0 0.0
      %733 = vmatpush.xpose.msra.mxu0 0.0
      %734 = vmatpush.xpose.msra.mxu0 0.0
      %735 = vmatpush.xpose.msra.mxu0 0.0
      %736 = vmatpush.xpose.msra.mxu0 0.0
      %737 = vmatpush.xpose.msra.mxu0 0.0
      %738 = vmatpush.xpose.msra.mxu0 %v722
      %739 = vmatpush.xpose.msra.mxu0 %v719
      %740 = vmatmul.f32.gmra.mxu0 %v719
      %v741 = vpop.f32.mrf.mxu0
      %v742 = vadd.f32 0.0, %v741
      %743 = vmatmul.f32.gmra.mxu0 %v722
      %v744 = vpop.f32.mrf.mxu0
      %v745 = vadd.f32 0.0, %v744
      %746 = vdwg.mxu0
      %v748 = vsel %vm253, %v159, 0
      %v751 = vsel %vm253, %v160, 0
      %753 = vmatpush.xpose.msra.mxu0 0.0
      %754 = vmatpush.xpose.msra.mxu0 0.0
      %755 = vmatpush.xpose.msra.mxu0 0.0
      %756 = vmatpush.xpose.msra.mxu0 0.0
      %757 = vmatpush.xpose.msra.mxu0 0.0
      %758 = vmatpush.xpose.msra.mxu0 0.0
      %759 = vmatpush.xpose.msra.mxu0 0.0
      %760 = vmatpush.xpose.msra.mxu0 0.0
      %761 = vmatpush.xpose.msra.mxu0 0.0
      %762 = vmatpush.xpose.msra.mxu0 0.0
      %763 = vmatpush.xpose.msra.mxu0 0.0
      %764 = vmatpush.xpose.msra.mxu0 0.0
      %765 = vmatpush.xpose.msra.mxu0 0.0
      %766 = vmatpush.xpose.msra.mxu0 0.0
      %767 = vmatpush.xpose.msra.mxu0 %v751
      %768 = vmatpush.xpose.msra.mxu0 %v748
      %769 = vmatmul.f32.gmra.mxu0 %v748
      %v770 = vpop.f32.mrf.mxu0
      %v771 = vadd.f32 0.0, %v770
      %772 = vmatmul.f32.gmra.mxu0 %v751
      %v773 = vpop.f32.mrf.mxu0
      %v774 = vadd.f32 0.0, %v773
      %775 = vdwg.mxu0
      %v777 = vsel %vm253, %v161, 0
      %v780 = vsel %vm253, %v162, 0
      %782 = vmatpush.xpose.msra.mxu0 0.0
      %783 = vmatpush.xpose.msra.mxu0 0.0
      %784 = vmatpush.xpose.msra.mxu0 0.0
      %785 = vmatpush.xpose.msra.mxu0 0.0
      %786 = vmatpush.xpose.msra.mxu0 0.0
      %787 = vmatpush.xpose.msra.mxu0 0.0
      %788 = vmatpush.xpose.msra.mxu0 0.0
      %789 = vmatpush.xpose.msra.mxu0 0.0
      %790 = vmatpush.xpose.msra.mxu0 0.0
      %791 = vmatpush.xpose.msra.mxu0 0.0
      %792 = vmatpush.xpose.msra.mxu0 0.0
      %793 = vmatpush.xpose.msra.mxu0 0.0
      %794 = vmatpush.xpose.msra.mxu0 0.0
      %795 = vmatpush.xpose.msra.mxu0 0.0
      %796 = vmatpush.xpose.msra.mxu0 %v780
      %797 = vmatpush.xpose.msra.mxu0 %v777
      %798 = vmatmul.f32.gmra.mxu0 %v777
      %v799 = vpop.f32.mrf.mxu0
      %v800 = vadd.f32 0.0, %v799
      %801 = vmatmul.f32.gmra.mxu0 %v780
      %v802 = vpop.f32.mrf.mxu0
      %v803 = vadd.f32 0.0, %v802
      %804 = vdwg.mxu0
      %v806 = vsel %vm253, %v163, 0
      %v809 = vsel %vm253, %v164, 0
      %811 = vmatpush.xpose.msra.mxu0 0.0
      %812 = vmatpush.xpose.msra.mxu0 0.0
      %813 = vmatpush.xpose.msra.mxu0 0.0
      %814 = vmatpush.xpose.msra.mxu0 0.0
      %815 = vmatpush.xpose.msra.mxu0 0.0
      %816 = vmatpush.xpose.msra.mxu0 0.0
      %817 = vmatpush.xpose.msra.mxu0 0.0
      %818 = vmatpush.xpose.msra.mxu0 0.0
      %819 = vmatpush.xpose.msra.mxu0 0.0
      %820 = vmatpush.xpose.msra.mxu0 0.0
      %821 = vmatpush.xpose.msra.mxu0 0.0
      %822 = vmatpush.xpose.msra.mxu0 0.0
      %823 = vmatpush.xpose.msra.mxu0 0.0
      %824 = vmatpush.xpose.msra.mxu0 0.0
      %825 = vmatpush.xpose.msra.mxu0 %v809
      %826 = vmatpush.xpose.msra.mxu0 %v806
      %827 = vmatmul.f32.gmra.mxu0 %v806
      %v828 = vpop.f32.mrf.mxu0
      %v829 = vadd.f32 0.0, %v828
      %830 = vmatmul.f32.gmra.mxu0 %v809
      %v831 = vpop.f32.mrf.mxu0
      %v832 = vadd.f32 0.0, %v831
      %833 = vdwg.mxu0
      %v835 = vsel %vm253, %v165, 0
      %v838 = vsel %vm253, %v166, 0
      %840 = vmatpush.xpose.msra.mxu0 0.0
      %841 = vmatpush.xpose.msra.mxu0 0.0
      %842 = vmatpush.xpose.msra.mxu0 0.0
      %843 = vmatpush.xpose.msra.mxu0 0.0
      %844 = vmatpush.xpose.msra.mxu0 0.0
      %845 = vmatpush.xpose.msra.mxu0 0.0
      %846 = vmatpush.xpose.msra.mxu0 0.0
      %847 = vmatpush.xpose.msra.mxu0 0.0
      %848 = vmatpush.xpose.msra.mxu0 0.0
      %849 = vmatpush.xpose.msra.mxu0 0.0
      %850 = vmatpush.xpose.msra.mxu0 0.0
      %851 = vmatpush.xpose.msra.mxu0 0.0
      %852 = vmatpush.xpose.msra.mxu0 0.0
      %853 = vmatpush.xpose.msra.mxu0 0.0
      %854 = vmatpush.xpose.msra.mxu0 %v838
      %855 = vmatpush.xpose.msra.mxu0 %v835
      %856 = vmatmul.f32.gmra.mxu0 %v835
      %v857 = vpop.f32.mrf.mxu0
      %v858 = vadd.f32 0.0, %v857
      %859 = vmatmul.f32.gmra.mxu0 %v838
      %v860 = vpop.f32.mrf.mxu0
      %v861 = vadd.f32 0.0, %v860
      %862 = vdwg.mxu0
      %v864 = vsel %vm253, %v167, 0
      %v867 = vsel %vm253, %v168, 0
      %869 = vmatpush.xpose.msra.mxu0 0.0
      %870 = vmatpush.xpose.msra.mxu0 0.0
      %871 = vmatpush.xpose.msra.mxu0 0.0
      %872 = vmatpush.xpose.msra.mxu0 0.0
      %873 = vmatpush.xpose.msra.mxu0 0.0
      %874 = vmatpush.xpose.msra.mxu0 0.0
      %875 = vmatpush.xpose.msra.mxu0 0.0
      %876 = vmatpush.xpose.msra.mxu0 0.0
      %877 = vmatpush.xpose.msra.mxu0 0.0
      %878 = vmatpush.xpose.msra.mxu0 0.0
      %879 = vmatpush.xpose.msra.mxu0 0.0
      %880 = vmatpush.xpose.msra.mxu0 0.0
      %881 = vmatpush.xpose.msra.mxu0 0.0
      %882 = vmatpush.xpose.msra.mxu0 0.0
      %883 = vmatpush.xpose.msra.mxu0 %v867
      %884 = vmatpush.xpose.msra.mxu0 %v864
      %885 = vmatmul.f32.gmra.mxu0 %v864
      %v886 = vpop.f32.mrf.mxu0
      %v887 = vadd.f32 0.0, %v886
      %888 = vmatmul.f32.gmra.mxu0 %v867
      %v889 = vpop.f32.mrf.mxu0
      %v890 = vadd.f32 0.0, %v889
      %891 = vdwg.mxu0
      %v893 = vsel %vm253, %v169, 0
      %v896 = vsel %vm253, %v170, 0
      %898 = vmatpush.xpose.msra.mxu0 0.0
      %899 = vmatpush.xpose.msra.mxu0 0.0
      %900 = vmatpush.xpose.msra.mxu0 0.0
      %901 = vmatpush.xpose.msra.mxu0 0.0
      %902 = vmatpush.xpose.msra.mxu0 0.0
      %903 = vmatpush.xpose.msra.mxu0 0.0
      %904 = vmatpush.xpose.msra.mxu0 0.0
      %905 = vmatpush.xpose.msra.mxu0 0.0
      %906 = vmatpush.xpose.msra.mxu0 0.0
      %907 = vmatpush.xpose.msra.mxu0 0.0
      %908 = vmatpush.xpose.msra.mxu0 0.0
      %909 = vmatpush.xpose.msra.mxu0 0.0
      %910 = vmatpush.xpose.msra.mxu0 0.0
      %911 = vmatpush.xpose.msra.mxu0 0.0
      %912 = vmatpush.xpose.msra.mxu0 %v896
      %913 = vmatpush.xpose.msra.mxu0 %v893
      %914 = vmatmul.f32.gmra.mxu0 %v893
      %v915 = vpop.f32.mrf.mxu0
      %v916 = vadd.f32 0.0, %v915
      %917 = vmatmul.f32.gmra.mxu0 %v896
      %v918 = vpop.f32.mrf.mxu0
      %v919 = vadd.f32 0.0, %v918
      %920 = vdwg.mxu0
      %v922 = vsel %vm253, %v171, 0
      %v925 = vsel %vm253, %v172, 0
      %927 = vmatpush.xpose.msra.mxu0 0.0
      %928 = vmatpush.xpose.msra.mxu0 0.0
      %929 = vmatpush.xpose.msra.mxu0 0.0
      %930 = vmatpush.xpose.msra.mxu0 0.0
      %931 = vmatpush.xpose.msra.mxu0 0.0
      %932 = vmatpush.xpose.msra.mxu0 0.0
      %933 = vmatpush.xpose.msra.mxu0 0.0
      %934 = vmatpush.xpose.msra.mxu0 0.0
      %935 = vmatpush.xpose.msra.mxu0 0.0
      %936 = vmatpush.xpose.msra.mxu0 0.0
      %937 = vmatpush.xpose.msra.mxu0 0.0
      %938 = vmatpush.xpose.msra.mxu0 0.0
      %939 = vmatpush.xpose.msra.mxu0 0.0
      %940 = vmatpush.xpose.msra.mxu0 0.0
      %941 = vmatpush.xpose.msra.mxu0 %v925
      %942 = vmatpush.xpose.msra.mxu0 %v922
      %943 = vmatmul.f32.gmra.mxu0 %v922
      %v944 = vpop.f32.mrf.mxu0
      %v945 = vadd.f32 0.0, %v944
      %946 = vmatmul.f32.gmra.mxu0 %v925
      %v947 = vpop.f32.mrf.mxu0
      %v948 = vadd.f32 0.0, %v947
      %949 = vdwg.mxu0
      %v951 = vsel %vm253, %v173, 0
      %v954 = vsel %vm253, %v174, 0
      %956 = vmatpush.xpose.msra.mxu0 0.0
      %957 = vmatpush.xpose.msra.mxu0 0.0
      %958 = vmatpush.xpose.msra.mxu0 0.0
      %959 = vmatpush.xpose.msra.mxu0 0.0
      %960 = vmatpush.xpose.msra.mxu0 0.0
      %961 = vmatpush.xpose.msra.mxu0 0.0
      %962 = vmatpush.xpose.msra.mxu0 0.0
      %963 = vmatpush.xpose.msra.mxu0 0.0
      %964 = vmatpush.xpose.msra.mxu0 0.0
      %965 = vmatpush.xpose.msra.mxu0 0.0
      %966 = vmatpush.xpose.msra.mxu0 0.0
      %967 = vmatpush.xpose.msra.mxu0 0.0
      %968 = vmatpush.xpose.msra.mxu0 0.0
      %969 = vmatpush.xpose.msra.mxu0 0.0
      %970 = vmatpush.xpose.msra.mxu0 %v954
      %971 = vmatpush.xpose.msra.mxu0 %v951
      %972 = vmatmul.f32.gmra.mxu0 %v951
      %v973 = vpop.f32.mrf.mxu0
      %v974 = vadd.f32 0.0, %v973
      %975 = vmatmul.f32.gmra.mxu0 %v954
      %v976 = vpop.f32.mrf.mxu0
      %v977 = vadd.f32 0.0, %v976
      %978 = vdwg.mxu0
      %v980 = vsel %vm253, %v175, 0
      %v983 = vsel %vm253, %v176, 0
      %985 = vmatpush.xpose.msra.mxu0 0.0
      %986 = vmatpush.xpose.msra.mxu0 0.0
      %987 = vmatpush.xpose.msra.mxu0 0.0
      %988 = vmatpush.xpose.msra.mxu0 0.0
      %989 = vmatpush.xpose.msra.mxu0 0.0
      %990 = vmatpush.xpose.msra.mxu0 0.0
      %991 = vmatpush.xpose.msra.mxu0 0.0
      %992 = vmatpush.xpose.msra.mxu0 0.0
      %993 = vmatpush.xpose.msra.mxu0 0.0
      %994 = vmatpush.xpose.msra.mxu0 0.0
      %995 = vmatpush.xpose.msra.mxu0 0.0
      %996 = vmatpush.xpose.msra.mxu0 0.0
      %997 = vmatpush.xpose.msra.mxu0 0.0
      %998 = vmatpush.xpose.msra.mxu0 0.0
      %999 = vmatpush.xpose.msra.mxu0 %v983
      %1000 = vmatpush.xpose.msra.mxu0 %v980
      %1001 = vmatmul.f32.gmra.mxu0 %v980
      %v1002 = vpop.f32.mrf.mxu0
      %v1003 = vadd.f32 0.0, %v1002
      %1004 = vmatmul.f32.gmra.mxu0 %v983
      %v1005 = vpop.f32.mrf.mxu0
      %v1006 = vadd.f32 0.0, %v1005
      %1007 = vdwg.mxu0
      %v1009 = vsel %vm253, %v177, 0
      %v1012 = vsel %vm253, %v178, 0
      %1014 = vmatpush.xpose.msra.mxu0 0.0
      %1015 = vmatpush.xpose.msra.mxu0 0.0
      %1016 = vmatpush.xpose.msra.mxu0 0.0
      %1017 = vmatpush.xpose.msra.mxu0 0.0
      %1018 = vmatpush.xpose.msra.mxu0 0.0
      %1019 = vmatpush.xpose.msra.mxu0 0.0
      %1020 = vmatpush.xpose.msra.mxu0 0.0
      %1021 = vmatpush.xpose.msra.mxu0 0.0
      %1022 = vmatpush.xpose.msra.mxu0 0.0
      %1023 = vmatpush.xpose.msra.mxu0 0.0
      %1024 = vmatpush.xpose.msra.mxu0 0.0
      %1025 = vmatpush.xpose.msra.mxu0 0.0
      %1026 = vmatpush.xpose.msra.mxu0 0.0
      %1027 = vmatpush.xpose.msra.mxu0 0.0
      %1028 = vmatpush.xpose.msra.mxu0 %v1012
      %1029 = vmatpush.xpose.msra.mxu0 %v1009
      %1030 = vmatmul.f32.gmra.mxu0 %v1009
      %v1031 = vpop.f32.mrf.mxu0
      %v1032 = vadd.f32 0.0, %v1031
      %1033 = vmatmul.f32.gmra.mxu0 %v1012
      %v1034 = vpop.f32.mrf.mxu0
      %v1035 = vadd.f32 0.0, %v1034
      %1036 = vdwg.mxu0
      %v1038 = vsel %vm253, %v179, 0
      %v1041 = vsel %vm253, %v180, 0
      %1043 = vmatpush.xpose.msra.mxu0 0.0
      %1044 = vmatpush.xpose.msra.mxu0 0.0
      %1045 = vmatpush.xpose.msra.mxu0 0.0
      %1046 = vmatpush.xpose.msra.mxu0 0.0
      %1047 = vmatpush.xpose.msra.mxu0 0.0
      %1048 = vmatpush.xpose.msra.mxu0 0.0
      %1049 = vmatpush.xpose.msra.mxu0 0.0
      %1050 = vmatpush.xpose.msra.mxu0 0.0
      %1051 = vmatpush.xpose.msra.mxu0 0.0
      %1052 = vmatpush.xpose.msra.mxu0 0.0
      %1053 = vmatpush.xpose.msra.mxu0 0.0
      %1054 = vmatpush.xpose.msra.mxu0 0.0
      %1055 = vmatpush.xpose.msra.mxu0 0.0
      %1056 = vmatpush.xpose.msra.mxu0 0.0
      %1057 = vmatpush.xpose.msra.mxu0 %v1041
      %1058 = vmatpush.xpose.msra.mxu0 %v1038
      %1059 = vmatmul.f32.gmra.mxu0 %v1038
      %v1060 = vpop.f32.mrf.mxu0
      %v1061 = vadd.f32 0.0, %v1060
      %1062 = vmatmul.f32.gmra.mxu0 %v1041
      %v1063 = vpop.f32.mrf.mxu0
      %v1064 = vadd.f32 0.0, %v1063
      %1065 = vdwg.mxu0
      %v1067 = vsel %vm253, %v181, 0
      %v1070 = vsel %vm253, %v182, 0
      %1072 = vmatpush.xpose.msra.mxu0 0.0
      %1073 = vmatpush.xpose.msra.mxu0 0.0
      %1074 = vmatpush.xpose.msra.mxu0 0.0
      %1075 = vmatpush.xpose.msra.mxu0 0.0
      %1076 = vmatpush.xpose.msra.mxu0 0.0
      %1077 = vmatpush.xpose.msra.mxu0 0.0
      %1078 = vmatpush.xpose.msra.mxu0 0.0
      %1079 = vmatpush.xpose.msra.mxu0 0.0
      %1080 = vmatpush.xpose.msra.mxu0 0.0
      %1081 = vmatpush.xpose.msra.mxu0 0.0
      %1082 = vmatpush.xpose.msra.mxu0 0.0
      %1083 = vmatpush.xpose.msra.mxu0 0.0
      %1084 = vmatpush.xpose.msra.mxu0 0.0
      %1085 = vmatpush.xpose.msra.mxu0 0.0
      %1086 = vmatpush.xpose.msra.mxu0 %v1070
      %1087 = vmatpush.xpose.msra.mxu0 %v1067
      %1088 = vmatmul.f32.gmra.mxu0 %v1067
      %v1089 = vpop.f32.mrf.mxu0
      %v1090 = vadd.f32 0.0, %v1089
      %1091 = vmatmul.f32.gmra.mxu0 %v1070
      %v1092 = vpop.f32.mrf.mxu0
      %v1093 = vadd.f32 0.0, %v1092
      %1094 = vdwg.mxu0
      %v1096 = vsel %vm253, %v183, 0
      %v1099 = vsel %vm253, %v184, 0
      %1101 = vmatpush.xpose.msra.mxu0 0.0
      %1102 = vmatpush.xpose.msra.mxu0 0.0
      %1103 = vmatpush.xpose.msra.mxu0 0.0
      %1104 = vmatpush.xpose.msra.mxu0 0.0
      %1105 = vmatpush.xpose.msra.mxu0 0.0
      %1106 = vmatpush.xpose.msra.mxu0 0.0
      %1107 = vmatpush.xpose.msra.mxu0 0.0
      %1108 = vmatpush.xpose.msra.mxu0 0.0
      %1109 = vmatpush.xpose.msra.mxu0 0.0
      %1110 = vmatpush.xpose.msra.mxu0 0.0
      %1111 = vmatpush.xpose.msra.mxu0 0.0
      %1112 = vmatpush.xpose.msra.mxu0 0.0
      %1113 = vmatpush.xpose.msra.mxu0 0.0
      %1114 = vmatpush.xpose.msra.mxu0 0.0
      %1115 = vmatpush.xpose.msra.mxu0 %v1099
      %1116 = vmatpush.xpose.msra.mxu0 %v1096
      %1117 = vmatmul.f32.gmra.mxu0 %v1096
      %v1118 = vpop.f32.mrf.mxu0
      %v1119 = vadd.f32 0.0, %v1118
      %1120 = vmatmul.f32.gmra.mxu0 %v1099
      %v1121 = vpop.f32.mrf.mxu0
      %v1122 = vadd.f32 0.0, %v1121
      %1123 = vdwg.mxu0
      %v1125 = vsel %vm253, %v185, 0
      %v1128 = vsel %vm253, %v186, 0
      %1130 = vmatpush.xpose.msra.mxu0 0.0
      %1131 = vmatpush.xpose.msra.mxu0 0.0
      %1132 = vmatpush.xpose.msra.mxu0 0.0
      %1133 = vmatpush.xpose.msra.mxu0 0.0
      %1134 = vmatpush.xpose.msra.mxu0 0.0
      %1135 = vmatpush.xpose.msra.mxu0 0.0
      %1136 = vmatpush.xpose.msra.mxu0 0.0
      %1137 = vmatpush.xpose.msra.mxu0 0.0
      %1138 = vmatpush.xpose.msra.mxu0 0.0
      %1139 = vmatpush.xpose.msra.mxu0 0.0
      %1140 = vmatpush.xpose.msra.mxu0 0.0
      %1141 = vmatpush.xpose.msra.mxu0 0.0
      %1142 = vmatpush.xpose.msra.mxu0 0.0
      %1143 = vmatpush.xpose.msra.mxu0 0.0
      %1144 = vmatpush.xpose.msra.mxu0 %v1128
      %1145 = vmatpush.xpose.msra.mxu0 %v1125
      %1146 = vmatmul.f32.gmra.mxu0 %v1125
      %v1147 = vpop.f32.mrf.mxu0
      %v1148 = vadd.f32 0.0, %v1147
      %1149 = vmatmul.f32.gmra.mxu0 %v1128
      %v1150 = vpop.f32.mrf.mxu0
      %v1151 = vadd.f32 0.0, %v1150
      %1152 = vdwg.mxu0
      %v1154 = vsel %vm253, %v187, 0
      %v1157 = vsel %vm253, %v188, 0
      %1159 = vmatpush.xpose.msra.mxu0 0.0
      %1160 = vmatpush.xpose.msra.mxu0 0.0
      %1161 = vmatpush.xpose.msra.mxu0 0.0
      %1162 = vmatpush.xpose.msra.mxu0 0.0
      %1163 = vmatpush.xpose.msra.mxu0 0.0
      %1164 = vmatpush.xpose.msra.mxu0 0.0
      %1165 = vmatpush.xpose.msra.mxu0 0.0
      %1166 = vmatpush.xpose.msra.mxu0 0.0
      %1167 = vmatpush.xpose.msra.mxu0 0.0
      %1168 = vmatpush.xpose.msra.mxu0 0.0
      %1169 = vmatpush.xpose.msra.mxu0 0.0
      %1170 = vmatpush.xpose.msra.mxu0 0.0
      %1171 = vmatpush.xpose.msra.mxu0 0.0
      %1172 = vmatpush.xpose.msra.mxu0 0.0
      %1173 = vmatpush.xpose.msra.mxu0 %v1157
      %1174 = vmatpush.xpose.msra.mxu0 %v1154
      %1175 = vmatmul.f32.gmra.mxu0 %v1154
      %v1176 = vpop.f32.mrf.mxu0
      %v1177 = vadd.f32 0.0, %v1176
      %1178 = vmatmul.f32.gmra.mxu0 %v1157
      %v1179 = vpop.f32.mrf.mxu0
      %v1180 = vadd.f32 0.0, %v1179
      %1181 = vdwg.mxu0
      %v1183 = vsel %vm253, %v189, 0
      %v1186 = vsel %vm253, %v190, 0
      %1188 = vmatpush.xpose.msra.mxu0 0.0
      %1189 = vmatpush.xpose.msra.mxu0 0.0
      %1190 = vmatpush.xpose.msra.mxu0 0.0
      %1191 = vmatpush.xpose.msra.mxu0 0.0
      %1192 = vmatpush.xpose.msra.mxu0 0.0
      %1193 = vmatpush.xpose.msra.mxu0 0.0
      %1194 = vmatpush.xpose.msra.mxu0 0.0
      %1195 = vmatpush.xpose.msra.mxu0 0.0
      %1196 = vmatpush.xpose.msra.mxu0 0.0
      %1197 = vmatpush.xpose.msra.mxu0 0.0
      %1198 = vmatpush.xpose.msra.mxu0 0.0
      %1199 = vmatpush.xpose.msra.mxu0 0.0
      %1200 = vmatpush.xpose.msra.mxu0 0.0
      %1201 = vmatpush.xpose.msra.mxu0 0.0
      %1202 = vmatpush.xpose.msra.mxu0 %v1186
      %1203 = vmatpush.xpose.msra.mxu0 %v1183
      %1204 = vmatmul.f32.gmra.mxu0 %v1183
      %v1205 = vpop.f32.mrf.mxu0
      %v1206 = vadd.f32 0.0, %v1205
      %1207 = vmatmul.f32.gmra.mxu0 %v1186
      %v1208 = vpop.f32.mrf.mxu0
      %v1209 = vadd.f32 0.0, %v1208
      %1210 = vdwg.mxu0
      %v1212 = vsel %vm253, %v191, 0
      %v1215 = vsel %vm253, %v192, 0
      %1217 = vmatpush.xpose.msra.mxu0 0.0
      %1218 = vmatpush.xpose.msra.mxu0 0.0
      %1219 = vmatpush.xpose.msra.mxu0 0.0
      %1220 = vmatpush.xpose.msra.mxu0 0.0
      %1221 = vmatpush.xpose.msra.mxu0 0.0
      %1222 = vmatpush.xpose.msra.mxu0 0.0
      %1223 = vmatpush.xpose.msra.mxu0 0.0
      %1224 = vmatpush.xpose.msra.mxu0 0.0
      %1225 = vmatpush.xpose.msra.mxu0 0.0
      %1226 = vmatpush.xpose.msra.mxu0 0.0
      %1227 = vmatpush.xpose.msra.mxu0 0.0
      %1228 = vmatpush.xpose.msra.mxu0 0.0
      %1229 = vmatpush.xpose.msra.mxu0 0.0
      %1230 = vmatpush.xpose.msra.mxu0 0.0
      %1231 = vmatpush.xpose.msra.mxu0 %v1215
      %1232 = vmatpush.xpose.msra.mxu0 %v1212
      %1233 = vmatmul.f32.gmra.mxu0 %v1212
      %v1234 = vpop.f32.mrf.mxu0
      %v1235 = vadd.f32 0.0, %v1234
      %1236 = vmatmul.f32.gmra.mxu0 %v1215
      %v1237 = vpop.f32.mrf.mxu0
      %v1238 = vadd.f32 0.0, %v1237
      %1239 = vdwg.mxu0
      %v1241 = vsel %vm253, %v193, 0
      %v1244 = vsel %vm253, %v194, 0
      %1246 = vmatpush.xpose.msra.mxu0 0.0
      %1247 = vmatpush.xpose.msra.mxu0 0.0
      %1248 = vmatpush.xpose.msra.mxu0 0.0
      %1249 = vmatpush.xpose.msra.mxu0 0.0
      %1250 = vmatpush.xpose.msra.mxu0 0.0
      %1251 = vmatpush.xpose.msra.mxu0 0.0
      %1252 = vmatpush.xpose.msra.mxu0 0.0
      %1253 = vmatpush.xpose.msra.mxu0 0.0
      %1254 = vmatpush.xpose.msra.mxu0 0.0
      %1255 = vmatpush.xpose.msra.mxu0 0.0
      %1256 = vmatpush.xpose.msra.mxu0 0.0
      %1257 = vmatpush.xpose.msra.mxu0 0.0
      %1258 = vmatpush.xpose.msra.mxu0 0.0
      %1259 = vmatpush.xpose.msra.mxu0 0.0
      %1260 = vmatpush.xpose.msra.mxu0 %v1244
      %1261 = vmatpush.xpose.msra.mxu0 %v1241
      %1262 = vmatmul.f32.gmra.mxu0 %v1241
      %v1263 = vpop.f32.mrf.mxu0
      %v1264 = vadd.f32 0.0, %v1263
      %1265 = vmatmul.f32.gmra.mxu0 %v1244
      %v1266 = vpop.f32.mrf.mxu0
      %v1267 = vadd.f32 0.0, %v1266
      %1268 = vdwg.mxu0
      %v1270 = vsel %vm253, %v195, 0
      %v1273 = vsel %vm253, %v196, 0
      %1275 = vmatpush.xpose.msra.mxu0 0.0
      %1276 = vmatpush.xpose.msra.mxu0 0.0
      %1277 = vmatpush.xpose.msra.mxu0 0.0
      %1278 = vmatpush.xpose.msra.mxu0 0.0
      %1279 = vmatpush.xpose.msra.mxu0 0.0
      %1280 = vmatpush.xpose.msra.mxu0 0.0
      %1281 = vmatpush.xpose.msra.mxu0 0.0
      %1282 = vmatpush.xpose.msra.mxu0 0.0
      %1283 = vmatpush.xpose.msra.mxu0 0.0
      %1284 = vmatpush.xpose.msra.mxu0 0.0
      %1285 = vmatpush.xpose.msra.mxu0 0.0
      %1286 = vmatpush.xpose.msra.mxu0 0.0
      %1287 = vmatpush.xpose.msra.mxu0 0.0
      %1288 = vmatpush.xpose.msra.mxu0 0.0
      %1289 = vmatpush.xpose.msra.mxu0 %v1273
      %1290 = vmatpush.xpose.msra.mxu0 %v1270
      %1291 = vmatmul.f32.gmra.mxu0 %v1270
      %v1292 = vpop.f32.mrf.mxu0
      %v1293 = vadd.f32 0.0, %v1292
      %1294 = vmatmul.f32.gmra.mxu0 %v1273
      %v1295 = vpop.f32.mrf.mxu0
      %v1296 = vadd.f32 0.0, %v1295
      %1297 = vdwg.mxu0
      %v1299 = vsel %vm253, %v197, 0
      %v1302 = vsel %vm253, %v198, 0
      %1304 = vmatpush.xpose.msra.mxu0 0.0
      %1305 = vmatpush.xpose.msra.mxu0 0.0
      %1306 = vmatpush.xpose.msra.mxu0 0.0
      %1307 = vmatpush.xpose.msra.mxu0 0.0
      %1308 = vmatpush.xpose.msra.mxu0 0.0
      %1309 = vmatpush.xpose.msra.mxu0 0.0
      %1310 = vmatpush.xpose.msra.mxu0 0.0
      %1311 = vmatpush.xpose.msra.mxu0 0.0
      %1312 = vmatpush.xpose.msra.mxu0 0.0
      %1313 = vmatpush.xpose.msra.mxu0 0.0
      %1314 = vmatpush.xpose.msra.mxu0 0.0
      %1315 = vmatpush.xpose.msra.mxu0 0.0
      %1316 = vmatpush.xpose.msra.mxu0 0.0
      %1317 = vmatpush.xpose.msra.mxu0 0.0
      %1318 = vmatpush.xpose.msra.mxu0 %v1302
      %1319 = vmatpush.xpose.msra.mxu0 %v1299
      %1320 = vmatmul.f32.gmra.mxu0 %v1299
      %v1321 = vpop.f32.mrf.mxu0
      %v1322 = vadd.f32 0.0, %v1321
      %1323 = vmatmul.f32.gmra.mxu0 %v1302
      %v1324 = vpop.f32.mrf.mxu0
      %v1325 = vadd.f32 0.0, %v1324
      %1326 = vdwg.mxu0
      %v1328 = vsel %vm253, %v199, 0
      %v1331 = vsel %vm253, %v200, 0
      %1333 = vmatpush.xpose.msra.mxu0 0.0
      %1334 = vmatpush.xpose.msra.mxu0 0.0
      %1335 = vmatpush.xpose.msra.mxu0 0.0
      %1336 = vmatpush.xpose.msra.mxu0 0.0
      %1337 = vmatpush.xpose.msra.mxu0 0.0
      %1338 = vmatpush.xpose.msra.mxu0 0.0
      %1339 = vmatpush.xpose.msra.mxu0 0.0
      %1340 = vmatpush.xpose.msra.mxu0 0.0
      %1341 = vmatpush.xpose.msra.mxu0 0.0
      %1342 = vmatpush.xpose.msra.mxu0 0.0
      %1343 = vmatpush.xpose.msra.mxu0 0.0
      %1344 = vmatpush.xpose.msra.mxu0 0.0
      %1345 = vmatpush.xpose.msra.mxu0 0.0
      %1346 = vmatpush.xpose.msra.mxu0 0.0
      %1347 = vmatpush.xpose.msra.mxu0 %v1331
      %1348 = vmatpush.xpose.msra.mxu0 %v1328
      %1349 = vmatmul.f32.gmra.mxu0 %v1328
      %v1350 = vpop.f32.mrf.mxu0
      %v1351 = vadd.f32 0.0, %v1350
      %1352 = vmatmul.f32.gmra.mxu0 %v1331
      %v1353 = vpop.f32.mrf.mxu0
      %v1354 = vadd.f32 0.0, %v1353
      %1355 = vdwg.mxu0
      %v1357 = vsel %vm253, %v201, 0
      %v1360 = vsel %vm253, %v202, 0
      %1362 = vmatpush.xpose.msra.mxu0 0.0
      %1363 = vmatpush.xpose.msra.mxu0 0.0
      %1364 = vmatpush.xpose.msra.mxu0 0.0
      %1365 = vmatpush.xpose.msra.mxu0 0.0
      %1366 = vmatpush.xpose.msra.mxu0 0.0
      %1367 = vmatpush.xpose.msra.mxu0 0.0
      %1368 = vmatpush.xpose.msra.mxu0 0.0
      %1369 = vmatpush.xpose.msra.mxu0 0.0
      %1370 = vmatpush.xpose.msra.mxu0 0.0
      %1371 = vmatpush.xpose.msra.mxu0 0.0
      %1372 = vmatpush.xpose.msra.mxu0 0.0
      %1373 = vmatpush.xpose.msra.mxu0 0.0
      %1374 = vmatpush.xpose.msra.mxu0 0.0
      %1375 = vmatpush.xpose.msra.mxu0 0.0
      %1376 = vmatpush.xpose.msra.mxu0 %v1360
      %1377 = vmatpush.xpose.msra.mxu0 %v1357
      %1378 = vmatmul.f32.gmra.mxu0 %v1357
      %v1379 = vpop.f32.mrf.mxu0
      %v1380 = vadd.f32 0.0, %v1379
      %1381 = vmatmul.f32.gmra.mxu0 %v1360
      %v1382 = vpop.f32.mrf.mxu0
      %v1383 = vadd.f32 0.0, %v1382
      %1384 = vdwg.mxu0
      %v1386 = vsel %vm253, %v203, 0
      %v1389 = vsel %vm253, %v204, 0
      %1391 = vmatpush.xpose.msra.mxu0 0.0
      %1392 = vmatpush.xpose.msra.mxu0 0.0
      %1393 = vmatpush.xpose.msra.mxu0 0.0
      %1394 = vmatpush.xpose.msra.mxu0 0.0
      %1395 = vmatpush.xpose.msra.mxu0 0.0
      %1396 = vmatpush.xpose.msra.mxu0 0.0
      %1397 = vmatpush.xpose.msra.mxu0 0.0
      %1398 = vmatpush.xpose.msra.mxu0 0.0
      %1399 = vmatpush.xpose.msra.mxu0 0.0
      %1400 = vmatpush.xpose.msra.mxu0 0.0
      %1401 = vmatpush.xpose.msra.mxu0 0.0
      %1402 = vmatpush.xpose.msra.mxu0 0.0
      %1403 = vmatpush.xpose.msra.mxu0 0.0
      %1404 = vmatpush.xpose.msra.mxu0 0.0
      %1405 = vmatpush.xpose.msra.mxu0 %v1389
      %1406 = vmatpush.xpose.msra.mxu0 %v1386
      %1407 = vmatmul.f32.gmra.mxu0 %v1386
      %v1408 = vpop.f32.mrf.mxu0
      %v1409 = vadd.f32 0.0, %v1408
      %1410 = vmatmul.f32.gmra.mxu0 %v1389
      %v1411 = vpop.f32.mrf.mxu0
      %v1412 = vadd.f32 0.0, %v1411
      %1413 = vdwg.mxu0
      %v1415 = vsel %vm253, %v205, 0
      %v1418 = vsel %vm253, %v206, 0
      %1420 = vmatpush.xpose.msra.mxu0 0.0
      %1421 = vmatpush.xpose.msra.mxu0 0.0
      %1422 = vmatpush.xpose.msra.mxu0 0.0
      %1423 = vmatpush.xpose.msra.mxu0 0.0
      %1424 = vmatpush.xpose.msra.mxu0 0.0
      %1425 = vmatpush.xpose.msra.mxu0 0.0
      %1426 = vmatpush.xpose.msra.mxu0 0.0
      %1427 = vmatpush.xpose.msra.mxu0 0.0
      %1428 = vmatpush.xpose.msra.mxu0 0.0
      %1429 = vmatpush.xpose.msra.mxu0 0.0
      %1430 = vmatpush.xpose.msra.mxu0 0.0
      %1431 = vmatpush.xpose.msra.mxu0 0.0
      %1432 = vmatpush.xpose.msra.mxu0 0.0
      %1433 = vmatpush.xpose.msra.mxu0 0.0
      %1434 = vmatpush.xpose.msra.mxu0 %v1418
      %1435 = vmatpush.xpose.msra.mxu0 %v1415
      %1436 = vmatmul.f32.gmra.mxu0 %v1415
      %v1437 = vpop.f32.mrf.mxu0
      %v1438 = vadd.f32 0.0, %v1437
      %1439 = vmatmul.f32.gmra.mxu0 %v1418
      %v1440 = vpop.f32.mrf.mxu0
      %v1441 = vadd.f32 0.0, %v1440
      %1442 = vdwg.mxu0
      %v1444 = vsel %vm253, %v207, 0
      %v1447 = vsel %vm253, %v208, 0
      %1449 = vmatpush.xpose.msra.mxu0 0.0
      %1450 = vmatpush.xpose.msra.mxu0 0.0
      %1451 = vmatpush.xpose.msra.mxu0 0.0
      %1452 = vmatpush.xpose.msra.mxu0 0.0
      %1453 = vmatpush.xpose.msra.mxu0 0.0
      %1454 = vmatpush.xpose.msra.mxu0 0.0
      %1455 = vmatpush.xpose.msra.mxu0 0.0
      %1456 = vmatpush.xpose.msra.mxu0 0.0
      %1457 = vmatpush.xpose.msra.mxu0 0.0
      %1458 = vmatpush.xpose.msra.mxu0 0.0
      %1459 = vmatpush.xpose.msra.mxu0 0.0
      %1460 = vmatpush.xpose.msra.mxu0 0.0
      %1461 = vmatpush.xpose.msra.mxu0 0.0
      %1462 = vmatpush.xpose.msra.mxu0 0.0
      %1463 = vmatpush.xpose.msra.mxu0 %v1447
      %1464 = vmatpush.xpose.msra.mxu0 %v1444
      %1465 = vmatmul.f32.gmra.mxu0 %v1444
      %v1466 = vpop.f32.mrf.mxu0
      %v1467 = vadd.f32 0.0, %v1466
      %1468 = vmatmul.f32.gmra.mxu0 %v1447
      %v1469 = vpop.f32.mrf.mxu0
      %v1470 = vadd.f32 0.0, %v1469
      %1471 = vdwg.mxu0
      %v1473 = vsel %vm253, %v209, 0
      %v1476 = vsel %vm253, %v210, 0
      %1478 = vmatpush.xpose.msra.mxu0 0.0
      %1479 = vmatpush.xpose.msra.mxu0 0.0
      %1480 = vmatpush.xpose.msra.mxu0 0.0
      %1481 = vmatpush.xpose.msra.mxu0 0.0
      %1482 = vmatpush.xpose.msra.mxu0 0.0
      %1483 = vmatpush.xpose.msra.mxu0 0.0
      %1484 = vmatpush.xpose.msra.mxu0 0.0
      %1485 = vmatpush.xpose.msra.mxu0 0.0
      %1486 = vmatpush.xpose.msra.mxu0 0.0
      %1487 = vmatpush.xpose.msra.mxu0 0.0
      %1488 = vmatpush.xpose.msra.mxu0 0.0
      %1489 = vmatpush.xpose.msra.mxu0 0.0
      %1490 = vmatpush.xpose.msra.mxu0 0.0
      %1491 = vmatpush.xpose.msra.mxu0 0.0
      %1492 = vmatpush.xpose.msra.mxu0 %v1476
      %1493 = vmatpush.xpose.msra.mxu0 %v1473
      %1494 = vmatmul.f32.gmra.mxu0 %v1473
      %v1495 = vpop.f32.mrf.mxu0
      %v1496 = vadd.f32 0.0, %v1495
      %1497 = vmatmul.f32.gmra.mxu0 %v1476
      %v1498 = vpop.f32.mrf.mxu0
      %v1499 = vadd.f32 0.0, %v1498
      %1500 = vdwg.mxu0
      %v1502 = vsel %vm253, %v211, 0
      %v1505 = vsel %vm253, %v212, 0
      %1507 = vmatpush.xpose.msra.mxu0 0.0
      %1508 = vmatpush.xpose.msra.mxu0 0.0
      %1509 = vmatpush.xpose.msra.mxu0 0.0
      %1510 = vmatpush.xpose.msra.mxu0 0.0
      %1511 = vmatpush.xpose.msra.mxu0 0.0
      %1512 = vmatpush.xpose.msra.mxu0 0.0
      %1513 = vmatpush.xpose.msra.mxu0 0.0
      %1514 = vmatpush.xpose.msra.mxu0 0.0
      %1515 = vmatpush.xpose.msra.mxu0 0.0
      %1516 = vmatpush.xpose.msra.mxu0 0.0
      %1517 = vmatpush.xpose.msra.mxu0 0.0
      %1518 = vmatpush.xpose.msra.mxu0 0.0
      %1519 = vmatpush.xpose.msra.mxu0 0.0
      %1520 = vmatpush.xpose.msra.mxu0 0.0
      %1521 = vmatpush.xpose.msra.mxu0 %v1505
      %1522 = vmatpush.xpose.msra.mxu0 %v1502
      %1523 = vmatmul.f32.gmra.mxu0 %v1502
      %v1524 = vpop.f32.mrf.mxu0
      %v1525 = vadd.f32 0.0, %v1524
      %1526 = vmatmul.f32.gmra.mxu0 %v1505
      %v1527 = vpop.f32.mrf.mxu0
      %v1528 = vadd.f32 0.0, %v1527
      %1529 = vdwg.mxu0
      %v1531 = vsel %vm253, %v213, 0
      %v1534 = vsel %vm253, %v214, 0
      %1536 = vmatpush.xpose.msra.mxu0 0.0
      %1537 = vmatpush.xpose.msra.mxu0 0.0
      %1538 = vmatpush.xpose.msra.mxu0 0.0
      %1539 = vmatpush.xpose.msra.mxu0 0.0
      %1540 = vmatpush.xpose.msra.mxu0 0.0
      %1541 = vmatpush.xpose.msra.mxu0 0.0
      %1542 = vmatpush.xpose.msra.mxu0 0.0
      %1543 = vmatpush.xpose.msra.mxu0 0.0
      %1544 = vmatpush.xpose.msra.mxu0 0.0
      %1545 = vmatpush.xpose.msra.mxu0 0.0
      %1546 = vmatpush.xpose.msra.mxu0 0.0
      %1547 = vmatpush.xpose.msra.mxu0 0.0
      %1548 = vmatpush.xpose.msra.mxu0 0.0
      %1549 = vmatpush.xpose.msra.mxu0 0.0
      %1550 = vmatpush.xpose.msra.mxu0 %v1534
      %1551 = vmatpush.xpose.msra.mxu0 %v1531
      %1552 = vmatmul.f32.gmra.mxu0 %v1531
      %v1553 = vpop.f32.mrf.mxu0
      %v1554 = vadd.f32 0.0, %v1553
      %1555 = vmatmul.f32.gmra.mxu0 %v1534
      %v1556 = vpop.f32.mrf.mxu0
      %v1557 = vadd.f32 0.0, %v1556
      %1558 = vdwg.mxu0
      %v1560 = vsel %vm253, %v215, 0
      %v1563 = vsel %vm253, %v216, 0
      %1565 = vmatpush.xpose.msra.mxu0 0.0
      %1566 = vmatpush.xpose.msra.mxu0 0.0
      %1567 = vmatpush.xpose.msra.mxu0 0.0
      %1568 = vmatpush.xpose.msra.mxu0 0.0
      %1569 = vmatpush.xpose.msra.mxu0 0.0
      %1570 = vmatpush.xpose.msra.mxu0 0.0
      %1571 = vmatpush.xpose.msra.mxu0 0.0
      %1572 = vmatpush.xpose.msra.mxu0 0.0
      %1573 = vmatpush.xpose.msra.mxu0 0.0
      %1574 = vmatpush.xpose.msra.mxu0 0.0
      %1575 = vmatpush.xpose.msra.mxu0 0.0
      %1576 = vmatpush.xpose.msra.mxu0 0.0
      %1577 = vmatpush.xpose.msra.mxu0 0.0
      %1578 = vmatpush.xpose.msra.mxu0 0.0
      %1579 = vmatpush.xpose.msra.mxu0 %v1563
      %1580 = vmatpush.xpose.msra.mxu0 %v1560
      %1581 = vmatmul.f32.gmra.mxu0 %v1560
      %v1582 = vpop.f32.mrf.mxu0
      %v1583 = vadd.f32 0.0, %v1582
      %1584 = vmatmul.f32.gmra.mxu0 %v1563
      %v1585 = vpop.f32.mrf.mxu0
      %v1586 = vadd.f32 0.0, %v1585
      %1587 = vdwg.mxu0
      %v1589 = vsel %vm253, %v217, 0
      %v1592 = vsel %vm253, %v218, 0
      %1594 = vmatpush.xpose.msra.mxu0 0.0
      %1595 = vmatpush.xpose.msra.mxu0 0.0
      %1596 = vmatpush.xpose.msra.mxu0 0.0
      %1597 = vmatpush.xpose.msra.mxu0 0.0
      %1598 = vmatpush.xpose.msra.mxu0 0.0
      %1599 = vmatpush.xpose.msra.mxu0 0.0
      %1600 = vmatpush.xpose.msra.mxu0 0.0
      %1601 = vmatpush.xpose.msra.mxu0 0.0
      %1602 = vmatpush.xpose.msra.mxu0 0.0
      %1603 = vmatpush.xpose.msra.mxu0 0.0
      %1604 = vmatpush.xpose.msra.mxu0 0.0
      %1605 = vmatpush.xpose.msra.mxu0 0.0
      %1606 = vmatpush.xpose.msra.mxu0 0.0
      %1607 = vmatpush.xpose.msra.mxu0 0.0
      %1608 = vmatpush.xpose.msra.mxu0 %v1592
      %1609 = vmatpush.xpose.msra.mxu0 %v1589
      %1610 = vmatmul.f32.gmra.mxu0 %v1589
      %v1611 = vpop.f32.mrf.mxu0
      %v1612 = vadd.f32 0.0, %v1611
      %1613 = vmatmul.f32.gmra.mxu0 %v1592
      %v1614 = vpop.f32.mrf.mxu0
      %v1615 = vadd.f32 0.0, %v1614
      %1616 = vdwg.mxu0
      %v1618 = vsel %vm253, %v219, 0
      %v1621 = vsel %vm253, %v220, 0
      %1623 = vmatpush.xpose.msra.mxu0 0.0
      %1624 = vmatpush.xpose.msra.mxu0 0.0
      %1625 = vmatpush.xpose.msra.mxu0 0.0
      %1626 = vmatpush.xpose.msra.mxu0 0.0
      %1627 = vmatpush.xpose.msra.mxu0 0.0
      %1628 = vmatpush.xpose.msra.mxu0 0.0
      %1629 = vmatpush.xpose.msra.mxu0 0.0
      %1630 = vmatpush.xpose.msra.mxu0 0.0
      %1631 = vmatpush.xpose.msra.mxu0 0.0
      %1632 = vmatpush.xpose.msra.mxu0 0.0
      %1633 = vmatpush.xpose.msra.mxu0 0.0
      %1634 = vmatpush.xpose.msra.mxu0 0.0
      %1635 = vmatpush.xpose.msra.mxu0 0.0
      %1636 = vmatpush.xpose.msra.mxu0 0.0
      %1637 = vmatpush.xpose.msra.mxu0 %v1621
      %1638 = vmatpush.xpose.msra.mxu0 %v1618
      %1639 = vmatmul.f32.gmra.mxu0 %v1618
      %v1640 = vpop.f32.mrf.mxu0
      %v1641 = vadd.f32 0.0, %v1640
      %1642 = vmatmul.f32.gmra.mxu0 %v1621
      %v1643 = vpop.f32.mrf.mxu0
      %v1644 = vadd.f32 0.0, %v1643
      %1645 = vdwg.mxu0
      %v1647 = vsel %vm253, %v221, 0
      %v1650 = vsel %vm253, %v222, 0
      %1652 = vmatpush.xpose.msra.mxu0 0.0
      %1653 = vmatpush.xpose.msra.mxu0 0.0
      %1654 = vmatpush.xpose.msra.mxu0 0.0
      %1655 = vmatpush.xpose.msra.mxu0 0.0
      %1656 = vmatpush.xpose.msra.mxu0 0.0
      %1657 = vmatpush.xpose.msra.mxu0 0.0
      %1658 = vmatpush.xpose.msra.mxu0 0.0
      %1659 = vmatpush.xpose.msra.mxu0 0.0
      %1660 = vmatpush.xpose.msra.mxu0 0.0
      %1661 = vmatpush.xpose.msra.mxu0 0.0
      %1662 = vmatpush.xpose.msra.mxu0 0.0
      %1663 = vmatpush.xpose.msra.mxu0 0.0
      %1664 = vmatpush.xpose.msra.mxu0 0.0
      %1665 = vmatpush.xpose.msra.mxu0 0.0
      %1666 = vmatpush.xpose.msra.mxu0 %v1650
      %1667 = vmatpush.xpose.msra.mxu0 %v1647
      %1668 = vmatmul.f32.gmra.mxu0 %v1647
      %v1669 = vpop.f32.mrf.mxu0
      %v1670 = vadd.f32 0.0, %v1669
      %1671 = vmatmul.f32.gmra.mxu0 %v1650
      %v1672 = vpop.f32.mrf.mxu0
      %v1673 = vadd.f32 0.0, %v1672
      %1674 = vdwg.mxu0
      %v1676 = vsel %vm253, %v223, 0
      %v1679 = vsel %vm253, %v224, 0
      %1681 = vmatpush.xpose.msra.mxu0 0.0
      %1682 = vmatpush.xpose.msra.mxu0 0.0
      %1683 = vmatpush.xpose.msra.mxu0 0.0
      %1684 = vmatpush.xpose.msra.mxu0 0.0
      %1685 = vmatpush.xpose.msra.mxu0 0.0
      %1686 = vmatpush.xpose.msra.mxu0 0.0
      %1687 = vmatpush.xpose.msra.mxu0 0.0
      %1688 = vmatpush.xpose.msra.mxu0 0.0
      %1689 = vmatpush.xpose.msra.mxu0 0.0
      %1690 = vmatpush.xpose.msra.mxu0 0.0
      %1691 = vmatpush.xpose.msra.mxu0 0.0
      %1692 = vmatpush.xpose.msra.mxu0 0.0
      %1693 = vmatpush.xpose.msra.mxu0 0.0
      %1694 = vmatpush.xpose.msra.mxu0 0.0
      %1695 = vmatpush.xpose.msra.mxu0 %v1679
      %1696 = vmatpush.xpose.msra.mxu0 %v1676
      %1697 = vmatmul.f32.gmra.mxu0 %v1676
      %v1698 = vpop.f32.mrf.mxu0
      %v1699 = vadd.f32 0.0, %v1698
      %1700 = vmatmul.f32.gmra.mxu0 %v1679
      %v1701 = vpop.f32.mrf.mxu0
      %v1702 = vadd.f32 0.0, %v1701
      %1703 = vdwg.mxu0
      %v1705 = vsel %vm253, %v225, 0
      %v1708 = vsel %vm253, %v226, 0
      %1710 = vmatpush.xpose.msra.mxu0 0.0
      %1711 = vmatpush.xpose.msra.mxu0 0.0
      %1712 = vmatpush.xpose.msra.mxu0 0.0
      %1713 = vmatpush.xpose.msra.mxu0 0.0
      %1714 = vmatpush.xpose.msra.mxu0 0.0
      %1715 = vmatpush.xpose.msra.mxu0 0.0
      %1716 = vmatpush.xpose.msra.mxu0 0.0
      %1717 = vmatpush.xpose.msra.mxu0 0.0
      %1718 = vmatpush.xpose.msra.mxu0 0.0
      %1719 = vmatpush.xpose.msra.mxu0 0.0
      %1720 = vmatpush.xpose.msra.mxu0 0.0
      %1721 = vmatpush.xpose.msra.mxu0 0.0
      %1722 = vmatpush.xpose.msra.mxu0 0.0
      %1723 = vmatpush.xpose.msra.mxu0 0.0
      %1724 = vmatpush.xpose.msra.mxu0 %v1708
      %1725 = vmatpush.xpose.msra.mxu0 %v1705
      %1726 = vmatmul.f32.gmra.mxu0 %v1705
      %v1727 = vpop.f32.mrf.mxu0
      %v1728 = vadd.f32 0.0, %v1727
      %1729 = vmatmul.f32.gmra.mxu0 %v1708
      %v1730 = vpop.f32.mrf.mxu0
      %v1731 = vadd.f32 0.0, %v1730
      %1732 = vdwg.mxu0
      %v1734 = vsel %vm253, %v227, 0
      %v1737 = vsel %vm253, %v228, 0
      %1739 = vmatpush.xpose.msra.mxu0 0.0
      %1740 = vmatpush.xpose.msra.mxu0 0.0
      %1741 = vmatpush.xpose.msra.mxu0 0.0
      %1742 = vmatpush.xpose.msra.mxu0 0.0
      %1743 = vmatpush.xpose.msra.mxu0 0.0
      %1744 = vmatpush.xpose.msra.mxu0 0.0
      %1745 = vmatpush.xpose.msra.mxu0 0.0
      %1746 = vmatpush.xpose.msra.mxu0 0.0
      %1747 = vmatpush.xpose.msra.mxu0 0.0
      %1748 = vmatpush.xpose.msra.mxu0 0.0
      %1749 = vmatpush.xpose.msra.mxu0 0.0
      %1750 = vmatpush.xpose.msra.mxu0 0.0
      %1751 = vmatpush.xpose.msra.mxu0 0.0
      %1752 = vmatpush.xpose.msra.mxu0 0.0
      %1753 = vmatpush.xpose.msra.mxu0 %v1737
      %1754 = vmatpush.xpose.msra.mxu0 %v1734
      %1755 = vmatmul.f32.gmra.mxu0 %v1734
      %v1756 = vpop.f32.mrf.mxu0
      %v1757 = vadd.f32 0.0, %v1756
      %1758 = vmatmul.f32.gmra.mxu0 %v1737
      %v1759 = vpop.f32.mrf.mxu0
      %v1760 = vadd.f32 0.0, %v1759
      %1761 = vdwg.mxu0
      %v1763 = vsel %vm253, %v229, 0
      %v1766 = vsel %vm253, %v230, 0
      %1768 = vmatpush.xpose.msra.mxu0 0.0
      %1769 = vmatpush.xpose.msra.mxu0 0.0
      %1770 = vmatpush.xpose.msra.mxu0 0.0
      %1771 = vmatpush.xpose.msra.mxu0 0.0
      %1772 = vmatpush.xpose.msra.mxu0 0.0
      %1773 = vmatpush.xpose.msra.mxu0 0.0
      %1774 = vmatpush.xpose.msra.mxu0 0.0
      %1775 = vmatpush.xpose.msra.mxu0 0.0
      %1776 = vmatpush.xpose.msra.mxu0 0.0
      %1777 = vmatpush.xpose.msra.mxu0 0.0
      %1778 = vmatpush.xpose.msra.mxu0 0.0
      %1779 = vmatpush.xpose.msra.mxu0 0.0
      %1780 = vmatpush.xpose.msra.mxu0 0.0
      %1781 = vmatpush.xpose.msra.mxu0 0.0
      %1782 = vmatpush.xpose.msra.mxu0 %v1766
      %1783 = vmatpush.xpose.msra.mxu0 %v1763
      %1784 = vmatmul.f32.gmra.mxu0 %v1763
      %v1785 = vpop.f32.mrf.mxu0
      %v1786 = vadd.f32 0.0, %v1785
      %1787 = vmatmul.f32.gmra.mxu0 %v1766
      %v1788 = vpop.f32.mrf.mxu0
      %v1789 = vadd.f32 0.0, %v1788
      %1790 = vdwg.mxu0
      %v1792 = vsel %vm253, %v231, 0
      %v1795 = vsel %vm253, %v232, 0
      %1797 = vmatpush.xpose.msra.mxu0 0.0
      %1798 = vmatpush.xpose.msra.mxu0 0.0
      %1799 = vmatpush.xpose.msra.mxu0 0.0
      %1800 = vmatpush.xpose.msra.mxu0 0.0
      %1801 = vmatpush.xpose.msra.mxu0 0.0
      %1802 = vmatpush.xpose.msra.mxu0 0.0
      %1803 = vmatpush.xpose.msra.mxu0 0.0
      %1804 = vmatpush.xpose.msra.mxu0 0.0
      %1805 = vmatpush.xpose.msra.mxu0 0.0
      %1806 = vmatpush.xpose.msra.mxu0 0.0
      %1807 = vmatpush.xpose.msra.mxu0 0.0
      %1808 = vmatpush.xpose.msra.mxu0 0.0
      %1809 = vmatpush.xpose.msra.mxu0 0.0
      %1810 = vmatpush.xpose.msra.mxu0 0.0
      %1811 = vmatpush.xpose.msra.mxu0 %v1795
      %1812 = vmatpush.xpose.msra.mxu0 %v1792
      %1813 = vmatmul.f32.gmra.mxu0 %v1792
      %v1814 = vpop.f32.mrf.mxu0
      %v1815 = vadd.f32 0.0, %v1814
      %1816 = vmatmul.f32.gmra.mxu0 %v1795
      %v1817 = vpop.f32.mrf.mxu0
      %v1818 = vadd.f32 0.0, %v1817
      %1819 = vdwg.mxu0
      %v1821 = vsel %vm253, %v233, 0
      %v1824 = vsel %vm253, %v234, 0
      %1826 = vmatpush.xpose.msra.mxu0 0.0
      %1827 = vmatpush.xpose.msra.mxu0 0.0
      %1828 = vmatpush.xpose.msra.mxu0 0.0
      %1829 = vmatpush.xpose.msra.mxu0 0.0
      %1830 = vmatpush.xpose.msra.mxu0 0.0
      %1831 = vmatpush.xpose.msra.mxu0 0.0
      %1832 = vmatpush.xpose.msra.mxu0 0.0
      %1833 = vmatpush.xpose.msra.mxu0 0.0
      %1834 = vmatpush.xpose.msra.mxu0 0.0
      %1835 = vmatpush.xpose.msra.mxu0 0.0
      %1836 = vmatpush.xpose.msra.mxu0 0.0
      %1837 = vmatpush.xpose.msra.mxu0 0.0
      %1838 = vmatpush.xpose.msra.mxu0 0.0
      %1839 = vmatpush.xpose.msra.mxu0 0.0
      %1840 = vmatpush.xpose.msra.mxu0 %v1824
      %1841 = vmatpush.xpose.msra.mxu0 %v1821
      %1842 = vmatmul.f32.gmra.mxu0 %v1821
      %v1843 = vpop.f32.mrf.mxu0
      %v1844 = vadd.f32 0.0, %v1843
      %1845 = vmatmul.f32.gmra.mxu0 %v1824
      %v1846 = vpop.f32.mrf.mxu0
      %v1847 = vadd.f32 0.0, %v1846
      %1848 = vdwg.mxu0
      %v1850 = vsel %vm253, %v235, 0
      %v1853 = vsel %vm253, %v236, 0
      %1855 = vmatpush.xpose.msra.mxu0 0.0
      %1856 = vmatpush.xpose.msra.mxu0 0.0
      %1857 = vmatpush.xpose.msra.mxu0 0.0
      %1858 = vmatpush.xpose.msra.mxu0 0.0
      %1859 = vmatpush.xpose.msra.mxu0 0.0
      %1860 = vmatpush.xpose.msra.mxu0 0.0
      %1861 = vmatpush.xpose.msra.mxu0 0.0
      %1862 = vmatpush.xpose.msra.mxu0 0.0
      %1863 = vmatpush.xpose.msra.mxu0 0.0
      %1864 = vmatpush.xpose.msra.mxu0 0.0
      %1865 = vmatpush.xpose.msra.mxu0 0.0
      %1866 = vmatpush.xpose.msra.mxu0 0.0
      %1867 = vmatpush.xpose.msra.mxu0 0.0
      %1868 = vmatpush.xpose.msra.mxu0 0.0
      %1869 = vmatpush.xpose.msra.mxu0 %v1853
      %1870 = vmatpush.xpose.msra.mxu0 %v1850
      %1871 = vmatmul.f32.gmra.mxu0 %v1850
      %v1872 = vpop.f32.mrf.mxu0
      %v1873 = vadd.f32 0.0, %v1872
      %1874 = vmatmul.f32.gmra.mxu0 %v1853
      %v1875 = vpop.f32.mrf.mxu0
      %v1876 = vadd.f32 0.0, %v1875
      %1877 = vdwg.mxu0
      %v1879 = vsel %vm253, %v237, 0
      %v1882 = vsel %vm253, %v238, 0
      %1884 = vmatpush.xpose.msra.mxu0 0.0
      %1885 = vmatpush.xpose.msra.mxu0 0.0
      %1886 = vmatpush.xpose.msra.mxu0 0.0
      %1887 = vmatpush.xpose.msra.mxu0 0.0
      %1888 = vmatpush.xpose.msra.mxu0 0.0
      %1889 = vmatpush.xpose.msra.mxu0 0.0
      %1890 = vmatpush.xpose.msra.mxu0 0.0
      %1891 = vmatpush.xpose.msra.mxu0 0.0
      %1892 = vmatpush.xpose.msra.mxu0 0.0
      %1893 = vmatpush.xpose.msra.mxu0 0.0
      %1894 = vmatpush.xpose.msra.mxu0 0.0
      %1895 = vmatpush.xpose.msra.mxu0 0.0
      %1896 = vmatpush.xpose.msra.mxu0 0.0
      %1897 = vmatpush.xpose.msra.mxu0 0.0
      %1898 = vmatpush.xpose.msra.mxu0 %v1882
      %1899 = vmatpush.xpose.msra.mxu0 %v1879
      %1900 = vmatmul.f32.gmra.mxu0 %v1879
      %v1901 = vpop.f32.mrf.mxu0
      %v1902 = vadd.f32 0.0, %v1901
      %1903 = vmatmul.f32.gmra.mxu0 %v1882
      %v1904 = vpop.f32.mrf.mxu0
      %v1905 = vadd.f32 0.0, %v1904
      %1906 = vdwg.mxu0
      %v1908 = vsel %vm253, %v239, 0
      %v1911 = vsel %vm253, %v240, 0
      %1913 = vmatpush.xpose.msra.mxu0 0.0
      %1914 = vmatpush.xpose.msra.mxu0 0.0
      %1915 = vmatpush.xpose.msra.mxu0 0.0
      %1916 = vmatpush.xpose.msra.mxu0 0.0
      %1917 = vmatpush.xpose.msra.mxu0 0.0
      %1918 = vmatpush.xpose.msra.mxu0 0.0
      %1919 = vmatpush.xpose.msra.mxu0 0.0
      %1920 = vmatpush.xpose.msra.mxu0 0.0
      %1921 = vmatpush.xpose.msra.mxu0 0.0
      %1922 = vmatpush.xpose.msra.mxu0 0.0
      %1923 = vmatpush.xpose.msra.mxu0 0.0
      %1924 = vmatpush.xpose.msra.mxu0 0.0
      %1925 = vmatpush.xpose.msra.mxu0 0.0
      %1926 = vmatpush.xpose.msra.mxu0 0.0
      %1927 = vmatpush.xpose.msra.mxu0 %v1911
      %1928 = vmatpush.xpose.msra.mxu0 %v1908
      %1929 = vmatmul.f32.gmra.mxu0 %v1908
      %v1930 = vpop.f32.mrf.mxu0
      %v1931 = vadd.f32 0.0, %v1930
      %1932 = vmatmul.f32.gmra.mxu0 %v1911
      %v1933 = vpop.f32.mrf.mxu0
      %v1934 = vadd.f32 0.0, %v1933
      %1935 = vdwg.mxu0
      %v1937 = vsel %vm253, %v241, 0
      %v1940 = vsel %vm253, %v242, 0
      %1942 = vmatpush.xpose.msra.mxu0 0.0
      %1943 = vmatpush.xpose.msra.mxu0 0.0
      %1944 = vmatpush.xpose.msra.mxu0 0.0
      %1945 = vmatpush.xpose.msra.mxu0 0.0
      %1946 = vmatpush.xpose.msra.mxu0 0.0
      %1947 = vmatpush.xpose.msra.mxu0 0.0
      %1948 = vmatpush.xpose.msra.mxu0 0.0
      %1949 = vmatpush.xpose.msra.mxu0 0.0
      %1950 = vmatpush.xpose.msra.mxu0 0.0
      %1951 = vmatpush.xpose.msra.mxu0 0.0
      %1952 = vmatpush.xpose.msra.mxu0 0.0
      %1953 = vmatpush.xpose.msra.mxu0 0.0
      %1954 = vmatpush.xpose.msra.mxu0 0.0
      %1955 = vmatpush.xpose.msra.mxu0 0.0
      %1956 = vmatpush.xpose.msra.mxu0 %v1940
      %1957 = vmatpush.xpose.msra.mxu0 %v1937
      %1958 = vmatmul.f32.gmra.mxu0 %v1937
      %v1959 = vpop.f32.mrf.mxu0
      %v1960 = vadd.f32 0.0, %v1959
      %1961 = vmatmul.f32.gmra.mxu0 %v1940
      %v1962 = vpop.f32.mrf.mxu0
      %v1963 = vadd.f32 0.0, %v1962
      %1964 = vdwg.mxu0
      %v1966 = vsel %vm253, %v243, 0
      %v1969 = vsel %vm253, %v244, 0
      %1971 = vmatpush.xpose.msra.mxu0 0.0
      %1972 = vmatpush.xpose.msra.mxu0 0.0
      %1973 = vmatpush.xpose.msra.mxu0 0.0
      %1974 = vmatpush.xpose.msra.mxu0 0.0
      %1975 = vmatpush.xpose.msra.mxu0 0.0
      %1976 = vmatpush.xpose.msra.mxu0 0.0
      %1977 = vmatpush.xpose.msra.mxu0 0.0
      %1978 = vmatpush.xpose.msra.mxu0 0.0
      %1979 = vmatpush.xpose.msra.mxu0 0.0
      %1980 = vmatpush.xpose.msra.mxu0 0.0
      %1981 = vmatpush.xpose.msra.mxu0 0.0
      %1982 = vmatpush.xpose.msra.mxu0 0.0
      %1983 = vmatpush.xpose.msra.mxu0 0.0
      %1984 = vmatpush.xpose.msra.mxu0 0.0
      %1985 = vmatpush.xpose.msra.mxu0 %v1969
      %1986 = vmatpush.xpose.msra.mxu0 %v1966
      %1987 = vmatmul.f32.gmra.mxu0 %v1966
      %v1988 = vpop.f32.mrf.mxu0
      %v1989 = vadd.f32 0.0, %v1988
      %1990 = vmatmul.f32.gmra.mxu0 %v1969
      %v1991 = vpop.f32.mrf.mxu0
      %v1992 = vadd.f32 0.0, %v1991
      %1993 = vdwg.mxu0
      %v1995 = vsel %vm253, %v245, 0
      %v1998 = vsel %vm253, %v246, 0
      %2000 = vmatpush.xpose.msra.mxu0 0.0
      %2001 = vmatpush.xpose.msra.mxu0 0.0
      %2002 = vmatpush.xpose.msra.mxu0 0.0
      %2003 = vmatpush.xpose.msra.mxu0 0.0
      %2004 = vmatpush.xpose.msra.mxu0 0.0
      %2005 = vmatpush.xpose.msra.mxu0 0.0
      %2006 = vmatpush.xpose.msra.mxu0 0.0
      %2007 = vmatpush.xpose.msra.mxu0 0.0
      %2008 = vmatpush.xpose.msra.mxu0 0.0
      %2009 = vmatpush.xpose.msra.mxu0 0.0
      %2010 = vmatpush.xpose.msra.mxu0 0.0
      %2011 = vmatpush.xpose.msra.mxu0 0.0
      %2012 = vmatpush.xpose.msra.mxu0 0.0
      %2013 = vmatpush.xpose.msra.mxu0 0.0
      %2014 = vmatpush.xpose.msra.mxu0 %v1998
      %2015 = vmatpush.xpose.msra.mxu0 %v1995
      %2016 = vmatmul.f32.gmra.mxu0 %v1995
      %v2017 = vpop.f32.mrf.mxu0
      %v2018 = vadd.f32 0.0, %v2017
      %2019 = vmatmul.f32.gmra.mxu0 %v1998
      %v2020 = vpop.f32.mrf.mxu0
      %v2021 = vadd.f32 0.0, %v2020
      %2022 = vdwg.mxu0
      %v2024 = vsel %vm253, %v247, 0
      %v2027 = vsel %vm253, %v248, 0
      %2029 = vmatpush.xpose.msra.mxu0 0.0
      %2030 = vmatpush.xpose.msra.mxu0 0.0
      %2031 = vmatpush.xpose.msra.mxu0 0.0
      %2032 = vmatpush.xpose.msra.mxu0 0.0
      %2033 = vmatpush.xpose.msra.mxu0 0.0
      %2034 = vmatpush.xpose.msra.mxu0 0.0
      %2035 = vmatpush.xpose.msra.mxu0 0.0
      %2036 = vmatpush.xpose.msra.mxu0 0.0
      %2037 = vmatpush.xpose.msra.mxu0 0.0
      %2038 = vmatpush.xpose.msra.mxu0 0.0
      %2039 = vmatpush.xpose.msra.mxu0 0.0
      %2040 = vmatpush.xpose.msra.mxu0 0.0
      %2041 = vmatpush.xpose.msra.mxu0 0.0
      %2042 = vmatpush.xpose.msra.mxu0 0.0
      %2043 = vmatpush.xpose.msra.mxu0 %v2027
      %2044 = vmatpush.xpose.msra.mxu0 %v2024
      %2045 = vmatmul.f32.gmra.mxu0 %v2024
      %v2046 = vpop.f32.mrf.mxu0
      %v2047 = vadd.f32 0.0, %v2046
      %2048 = vmatmul.f32.gmra.mxu0 %v2027
      %v2049 = vpop.f32.mrf.mxu0
      %v2050 = vadd.f32 0.0, %v2049
      %2051 = vdwg.mxu0
      %v2053 = vsel %vm253, %v249, 0
      %v2056 = vsel %vm253, %v250, 0
      %2058 = vmatpush.xpose.msra.mxu0 0.0
      %2059 = vmatpush.xpose.msra.mxu0 0.0
      %2060 = vmatpush.xpose.msra.mxu0 0.0
      %2061 = vmatpush.xpose.msra.mxu0 0.0
      %2062 = vmatpush.xpose.msra.mxu0 0.0
      %2063 = vmatpush.xpose.msra.mxu0 0.0
      %2064 = vmatpush.xpose.msra.mxu0 0.0
      %2065 = vmatpush.xpose.msra.mxu0 0.0
      %2066 = vmatpush.xpose.msra.mxu0 0.0
      %2067 = vmatpush.xpose.msra.mxu0 0.0
      %2068 = vmatpush.xpose.msra.mxu0 0.0
      %2069 = vmatpush.xpose.msra.mxu0 0.0
      %2070 = vmatpush.xpose.msra.mxu0 0.0
      %2071 = vmatpush.xpose.msra.mxu0 0.0
      %2072 = vmatpush.xpose.msra.mxu0 %v2056
      %2073 = vmatpush.xpose.msra.mxu0 %v2053
      %2074 = vmatmul.f32.gmra.mxu0 %v2053
      %v2075 = vpop.f32.mrf.mxu0
      %v2076 = vadd.f32 0.0, %v2075
      %2077 = vmatmul.f32.gmra.mxu0 %v2056
      %v2078 = vpop.f32.mrf.mxu0
      %v2079 = vadd.f32 0.0, %v2078
      %2080 = vdwg.mxu0
      %v2082 = vsel %vm253, %v251, 0
      %v2085 = vsel %vm253, %v252, 0
      %2087 = vmatpush.xpose.msra.mxu0 0.0
      %2088 = vmatpush.xpose.msra.mxu0 0.0
      %2089 = vmatpush.xpose.msra.mxu0 0.0
      %2090 = vmatpush.xpose.msra.mxu0 0.0
      %2091 = vmatpush.xpose.msra.mxu0 0.0
      %2092 = vmatpush.xpose.msra.mxu0 0.0
      %2093 = vmatpush.xpose.msra.mxu0 0.0
      %2094 = vmatpush.xpose.msra.mxu0 0.0
      %2095 = vmatpush.xpose.msra.mxu0 0.0
      %2096 = vmatpush.xpose.msra.mxu0 0.0
      %2097 = vmatpush.xpose.msra.mxu0 0.0
      %2098 = vmatpush.xpose.msra.mxu0 0.0
      %2099 = vmatpush.xpose.msra.mxu0 0.0
      %2100 = vmatpush.xpose.msra.mxu0 0.0
      %2101 = vmatpush.xpose.msra.mxu0 %v2085
      %2102 = vmatpush.xpose.msra.mxu0 %v2082
      %2103 = vmatmul.f32.gmra.mxu0 %v2082
      %v2104 = vpop.f32.mrf.mxu0
      %v2105 = vadd.f32 0.0, %v2104
      %2106 = vmatmul.f32.gmra.mxu0 %v2085
      %v2107 = vpop.f32.mrf.mxu0
      %v2108 = vadd.f32 0.0, %v2107
      %2109 = vdwg.mxu0
      %vm2110 = vcmask 130048
      %2111 = vst.msk [vmem:[%s123] sm:$0xff] %vm2110, %v278
      %2112 = vst.msk [vmem:[%s123 + $0x8] sm:$0xff] %vm2110, %v281
      %2113 = vst.msk [vmem:[%s123 + $0x10] sm:$0xff] %vm2110, %v307
      %2114 = vst.msk [vmem:[%s123 + $0x18] sm:$0xff] %vm2110, %v310
      %2115 = vst.msk [vmem:[%s123 + $0x20] sm:$0xff] %vm2110, %v336
      %2116 = vst.msk [vmem:[%s123 + $0x28] sm:$0xff] %vm2110, %v339
      %2117 = vst.msk [vmem:[%s123 + $0x30] sm:$0xff] %vm2110, %v365
      %2118 = vst.msk [vmem:[%s123 + $0x38] sm:$0xff] %vm2110, %v368
      %2119 = vst.msk [vmem:[%s123 + $0x40] sm:$0xff] %vm2110, %v394
      %2120 = vst.msk [vmem:[%s123 + $0x48] sm:$0xff] %vm2110, %v397
      %2121 = vst.msk [vmem:[%s123 + $0x50] sm:$0xff] %vm2110, %v423
      %2122 = vst.msk [vmem:[%s123 + $0x58] sm:$0xff] %vm2110, %v426
      %2123 = vst.msk [vmem:[%s123 + $0x60] sm:$0xff] %vm2110, %v452
      %2124 = vst.msk [vmem:[%s123 + $0x68] sm:$0xff] %vm2110, %v455
      %2125 = vst.msk [vmem:[%s123 + $0x70] sm:$0xff] %vm2110, %v481
      %2126 = vst.msk [vmem:[%s123 + $0x78] sm:$0xff] %vm2110, %v484
      %2127 = vst.msk [vmem:[%s123 + $0x80] sm:$0xff] %vm2110, %v510
      %2128 = vst.msk [vmem:[%s123 + $0x88] sm:$0xff] %vm2110, %v513
      %2129 = vst.msk [vmem:[%s123 + $0x90] sm:$0xff] %vm2110, %v539
      %2130 = vst.msk [vmem:[%s123 + $0x98] sm:$0xff] %vm2110, %v542
      %2131 = vst.msk [vmem:[%s123 + $0xa0] sm:$0xff] %vm2110, %v568
      %2132 = vst.msk [vmem:[%s123 + $0xa8] sm:$0xff] %vm2110, %v571
      %2133 = vst.msk [vmem:[%s123 + $0xb0] sm:$0xff] %vm2110, %v597
      %2134 = vst.msk [vmem:[%s123 + $0xb8] sm:$0xff] %vm2110, %v600
      %2135 = vst.msk [vmem:[%s123 + $0xc0] sm:$0xff] %vm2110, %v626
      %2136 = vst.msk [vmem:[%s123 + $0xc8] sm:$0xff] %vm2110, %v629
      %2137 = vst.msk [vmem:[%s123 + $0xd0] sm:$0xff] %vm2110, %v655
      %2138 = vst.msk [vmem:[%s123 + $0xd8] sm:$0xff] %vm2110, %v658
      %2139 = vst.msk [vmem:[%s123 + $0xe0] sm:$0xff] %vm2110, %v684
      %2140 = vst.msk [vmem:[%s123 + $0xe8] sm:$0xff] %vm2110, %v687
      %2141 = vst.msk [vmem:[%s123 + $0xf0] sm:$0xff] %vm2110, %v713
      %2142 = vst.msk [vmem:[%s123 + $0xf8] sm:$0xff] %vm2110, %v716
      %2143 = vst.msk [vmem:[%s123 + $0x100] sm:$0xff] %vm2110, %v742
      %2144 = vst.msk [vmem:[%s123 + $0x108] sm:$0xff] %vm2110, %v745
      %2145 = vst.msk [vmem:[%s123 + $0x110] sm:$0xff] %vm2110, %v771
      %2146 = vst.msk [vmem:[%s123 + $0x118] sm:$0xff] %vm2110, %v774
      %2147 = vst.msk [vmem:[%s123 + $0x120] sm:$0xff] %vm2110, %v800
      %2148 = vst.msk [vmem:[%s123 + $0x128] sm:$0xff] %vm2110, %v803
      %2149 = vst.msk [vmem:[%s123 + $0x130] sm:$0xff] %vm2110, %v829
      %2150 = vst.msk [vmem:[%s123 + $0x138] sm:$0xff] %vm2110, %v832
      %2151 = vst.msk [vmem:[%s123 + $0x140] sm:$0xff] %vm2110, %v858
      %2152 = vst.msk [vmem:[%s123 + $0x148] sm:$0xff] %vm2110, %v861
      %2153 = vst.msk [vmem:[%s123 + $0x150] sm:$0xff] %vm2110, %v887
      %2154 = vst.msk [vmem:[%s123 + $0x158] sm:$0xff] %vm2110, %v890
      %2155 = vst.msk [vmem:[%s123 + $0x160] sm:$0xff] %vm2110, %v916
      %2156 = vst.msk [vmem:[%s123 + $0x168] sm:$0xff] %vm2110, %v919
      %2157 = vst.msk [vmem:[%s123 + $0x170] sm:$0xff] %vm2110, %v945
      %2158 = vst.msk [vmem:[%s123 + $0x178] sm:$0xff] %vm2110, %v948
      %2159 = vst.msk [vmem:[%s123 + $0x180] sm:$0xff] %vm2110, %v974
      %2160 = vst.msk [vmem:[%s123 + $0x188] sm:$0xff] %vm2110, %v977
      %2161 = vst.msk [vmem:[%s123 + $0x190] sm:$0xff] %vm2110, %v1003
      %2162 = vst.msk [vmem:[%s123 + $0x198] sm:$0xff] %vm2110, %v1006
      %2163 = vst.msk [vmem:[%s123 + $0x1a0] sm:$0xff] %vm2110, %v1032
      %2164 = vst.msk [vmem:[%s123 + $0x1a8] sm:$0xff] %vm2110, %v1035
      %2165 = vst.msk [vmem:[%s123 + $0x1b0] sm:$0xff] %vm2110, %v1061
      %2166 = vst.msk [vmem:[%s123 + $0x1b8] sm:$0xff] %vm2110, %v1064
      %2167 = vst.msk [vmem:[%s123 + $0x1c0] sm:$0xff] %vm2110, %v1090
      %2168 = vst.msk [vmem:[%s123 + $0x1c8] sm:$0xff] %vm2110, %v1093
      %2169 = vst.msk [vmem:[%s123 + $0x1d0] sm:$0xff] %vm2110, %v1119
      %2170 = vst.msk [vmem:[%s123 + $0x1d8] sm:$0xff] %vm2110, %v1122
      %2171 = vst.msk [vmem:[%s123 + $0x1e0] sm:$0xff] %vm2110, %v1148
      %2172 = vst.msk [vmem:[%s123 + $0x1e8] sm:$0xff] %vm2110, %v1151
      %2173 = vst.msk [vmem:[%s123 + $0x1f0] sm:$0xff] %vm2110, %v1177
      %2174 = vst.msk [vmem:[%s123 + $0x1f8] sm:$0xff] %vm2110, %v1180
      %2175 = vst.msk [vmem:[%s123 + $0x200] sm:$0xff] %vm2110, %v1206
      %2176 = vst.msk [vmem:[%s123 + $0x208] sm:$0xff] %vm2110, %v1209
      %2177 = vst.msk [vmem:[%s123 + $0x210] sm:$0xff] %vm2110, %v1235
      %2178 = vst.msk [vmem:[%s123 + $0x218] sm:$0xff] %vm2110, %v1238
      %2179 = vst.msk [vmem:[%s123 + $0x220] sm:$0xff] %vm2110, %v1264
      %2180 = vst.msk [vmem:[%s123 + $0x228] sm:$0xff] %vm2110, %v1267
      %2181 = vst.msk [vmem:[%s123 + $0x230] sm:$0xff] %vm2110, %v1293
      %2182 = vst.msk [vmem:[%s123 + $0x238] sm:$0xff] %vm2110, %v1296
      %2183 = vst.msk [vmem:[%s123 + $0x240] sm:$0xff] %vm2110, %v1322
      %2184 = vst.msk [vmem:[%s123 + $0x248] sm:$0xff] %vm2110, %v1325
      %2185 = vst.msk [vmem:[%s123 + $0x250] sm:$0xff] %vm2110, %v1351
      %2186 = vst.msk [vmem:[%s123 + $0x258] sm:$0xff] %vm2110, %v1354
      %2187 = vst.msk [vmem:[%s123 + $0x260] sm:$0xff] %vm2110, %v1380
      %2188 = vst.msk [vmem:[%s123 + $0x268] sm:$0xff] %vm2110, %v1383
      %2189 = vst.msk [vmem:[%s123 + $0x270] sm:$0xff] %vm2110, %v1409
      %2190 = vst.msk [vmem:[%s123 + $0x278] sm:$0xff] %vm2110, %v1412
      %2191 = vst.msk [vmem:[%s123 + $0x280] sm:$0xff] %vm2110, %v1438
      %2192 = vst.msk [vmem:[%s123 + $0x288] sm:$0xff] %vm2110, %v1441
      %2193 = vst.msk [vmem:[%s123 + $0x290] sm:$0xff] %vm2110, %v1467
      %2194 = vst.msk [vmem:[%s123 + $0x298] sm:$0xff] %vm2110, %v1470
      %2195 = vst.msk [vmem:[%s123 + $0x2a0] sm:$0xff] %vm2110, %v1496
      %2196 = vst.msk [vmem:[%s123 + $0x2a8] sm:$0xff] %vm2110, %v1499
      %2197 = vst.msk [vmem:[%s123 + $0x2b0] sm:$0xff] %vm2110, %v1525
      %2198 = vst.msk [vmem:[%s123 + $0x2b8] sm:$0xff] %vm2110, %v1528
      %2199 = vst.msk [vmem:[%s123 + $0x2c0] sm:$0xff] %vm2110, %v1554
      %2200 = vst.msk [vmem:[%s123 + $0x2c8] sm:$0xff] %vm2110, %v1557
      %2201 = vst.msk [vmem:[%s123 + $0x2d0] sm:$0xff] %vm2110, %v1583
      %2202 = vst.msk [vmem:[%s123 + $0x2d8] sm:$0xff] %vm2110, %v1586
      %2203 = vst.msk [vmem:[%s123 + $0x2e0] sm:$0xff] %vm2110, %v1612
      %2204 = vst.msk [vmem:[%s123 + $0x2e8] sm:$0xff] %vm2110, %v1615
      %2205 = vst.msk [vmem:[%s123 + $0x2f0] sm:$0xff] %vm2110, %v1641
      %2206 = vst.msk [vmem:[%s123 + $0x2f8] sm:$0xff] %vm2110, %v1644
      %2207 = vst.msk [vmem:[%s123 + $0x300] sm:$0xff] %vm2110, %v1670
      %2208 = vst.msk [vmem:[%s123 + $0x308] sm:$0xff] %vm2110, %v1673
      %2209 = vst.msk [vmem:[%s123 + $0x310] sm:$0xff] %vm2110, %v1699
      %2210 = vst.msk [vmem:[%s123 + $0x318] sm:$0xff] %vm2110, %v1702
      %2211 = vst.msk [vmem:[%s123 + $0x320] sm:$0xff] %vm2110, %v1728
      %2212 = vst.msk [vmem:[%s123 + $0x328] sm:$0xff] %vm2110, %v1731
      %2213 = vst.msk [vmem:[%s123 + $0x330] sm:$0xff] %vm2110, %v1757
      %2214 = vst.msk [vmem:[%s123 + $0x338] sm:$0xff] %vm2110, %v1760
      %2215 = vst.msk [vmem:[%s123 + $0x340] sm:$0xff] %vm2110, %v1786
      %2216 = vst.msk [vmem:[%s123 + $0x348] sm:$0xff] %vm2110, %v1789
      %2217 = vst.msk [vmem:[%s123 + $0x350] sm:$0xff] %vm2110, %v1815
      %2218 = vst.msk [vmem:[%s123 + $0x358] sm:$0xff] %vm2110, %v1818
      %2219 = vst.msk [vmem:[%s123 + $0x360] sm:$0xff] %vm2110, %v1844
      %2220 = vst.msk [vmem:[%s123 + $0x368] sm:$0xff] %vm2110, %v1847
      %2221 = vst.msk [vmem:[%s123 + $0x370] sm:$0xff] %vm2110, %v1873
      %2222 = vst.msk [vmem:[%s123 + $0x378] sm:$0xff] %vm2110, %v1876
      %2223 = vst.msk [vmem:[%s123 + $0x380] sm:$0xff] %vm2110, %v1902
      %2224 = vst.msk [vmem:[%s123 + $0x388] sm:$0xff] %vm2110, %v1905
      %2225 = vst.msk [vmem:[%s123 + $0x390] sm:$0xff] %vm2110, %v1931
      %2226 = vst.msk [vmem:[%s123 + $0x398] sm:$0xff] %vm2110, %v1934
      %2227 = vst.msk [vmem:[%s123 + $0x3a0] sm:$0xff] %vm2110, %v1960
      %2228 = vst.msk [vmem:[%s123 + $0x3a8] sm:$0xff] %vm2110, %v1963
      %2229 = vst.msk [vmem:[%s123 + $0x3b0] sm:$0xff] %vm2110, %v1989
      %2230 = vst.msk [vmem:[%s123 + $0x3b8] sm:$0xff] %vm2110, %v1992
      %2231 = vst.msk [vmem:[%s123 + $0x3c0] sm:$0xff] %vm2110, %v2018
      %2232 = vst.msk [vmem:[%s123 + $0x3c8] sm:$0xff] %vm2110, %v2021
      %2233 = vst.msk [vmem:[%s123 + $0x3d0] sm:$0xff] %vm2110, %v2047
      %2234 = vst.msk [vmem:[%s123 + $0x3d8] sm:$0xff] %vm2110, %v2050
      %2235 = vst.msk [vmem:[%s123 + $0x3e0] sm:$0xff] %vm2110, %v2076
      %2236 = vst.msk [vmem:[%s123 + $0x3e8] sm:$0xff] %vm2110, %v2079
      %2237 = vst.msk [vmem:[%s123 + $0x3f0] sm:$0xff] %vm2110, %v2105
      %2238 = vst.msk [vmem:[%s123 + $0x3f8] sm:$0xff] %vm2110, %v2108
      %s2239 = smul.u32 64, %s12
      %p2240 = scmp.lt.s32.totalorder %s2239, 255
      %s2241 = scalar_select %p2240, %s2239, 255
      %s2242 = smul.addr %s2241, 2
      %s2243 = smul.addr %s2242, 8
      %s2244 = scalar_lea.vmem %s1, %s2243
      // Predicated region
      $region25: #{tpu_custom_call.1} parent=23 // pred_check
        %p2245 = pneg %p56
      $region26: #{tpu_custom_call.1} parent=23 // pred_check_branch
        %2247 = sbr.rel (%p2245) target = $region28
      $region27: #{tpu_custom_call.1} parent=23 // pred_region
        %s2248 = smul.u32 64, %s12
      $region28: #{tpu_custom_call.1} parent=23 // pred_fallthru
        _
    $region24: #{tpu_custom_call.1} parent=5 // pred_fallthru
      _
    %p2249 = scmp.le.s32.totalorder 2, %s7
    // Predicated region
    $region29: #{tpu_custom_call.1} parent=5 // pred_check
      %p2250 = pneg %p2249
    $region30: #{tpu_custom_call.1} parent=5 // pred_check_branch
      %2252 = sbr.rel (%p2250) target = $region32
    $region31: #{tpu_custom_call.1} parent=5 // pred_region
      %s2253 = ssub.s32 %s7, 2
      // Predicated region
      $region33: #{tpu_custom_call.1} parent=31 // pred_check
        %p2254 = pneg %p62
      $region34: #{tpu_custom_call.1} parent=31 // pred_check_branch
        %2256 = sbr.rel (%p2254) target = $region36
      $region35: #{tpu_custom_call.1} parent=31 // pred_region
        %s2257 = smul.u32 64, %s13
        %p2258 = scmp.lt.s32.totalorder %s2257, 255
        %s2259 = scalar_select %p2258, %s2257, 255
        %s2260 = smul.addr %s2259, 2
        %s2261 = smul.addr %s2260, 8
        %s2262 = scalar_lea.vmem %s1, %s2261
      $region36: #{tpu_custom_call.1} parent=31 // pred_fallthru
        _
    $region32: #{tpu_custom_call.1} parent=5 // pred_fallthru
      _
  $region6: #{tpu_custom_call.1} parent=0 // loop_footer
    %s11 = sadd.s32 1, %s7
  $region7: #{tpu_custom_call.1} parent=0 // loop_footer_branch
    %6 = sbr.rel target = $region3
  $region8: #{tpu_custom_call.1} parent=0 // loop_exit
    _

</llo_original>
